<compile_context>
chip_gen: v7x
topology: tpu7x:2x2x1
jax: 0.10.0
libtpu: 0.0.40
codegen_flags: <defaults>
</compile_context>

<pallas_src>
import functools

import jax
import jax.numpy as jnp
from jax.experimental import pallas as pl
from jax.experimental.pallas import tpu as pltpu


def _round_up(x, m):
    return (x + m - 1) // m * m


def _vmem_budget_bytes():
    """Generation-aware VMEM budget (v5e/v6e: 128 MiB physical, v7x: 64 MiB)."""
    cap = 64 * 1024 * 1024  # conservative default (v7x)
    try:
        info = pltpu.get_tpu_info()
        cap = int(getattr(info, "vmem_capacity_bytes", cap)) or cap
    except Exception:
        pass
    return min((cap * 3) // 4, 112 * 1024 * 1024)


def _mish_f32(y):
    """Mish in f32; single exp + exact divide, PyTorch softplus threshold 20."""
    e = jnp.exp(jnp.minimum(y, 20.0))
    num = e * (e + 2.0)
    t = num / (num + 2.0)            # == tanh(softplus(y)); exact (not approx)
    return jnp.where(y > 20.0, y, y * t)


# ---------------------------------------------------------------------------
# The single fused kernel: base conv (im2col rows) -> pt1 / stage / pt2 ->
# split-K fuse, all per M-tile, entirely in VMEM.
# ---------------------------------------------------------------------------
def _csp_fused_kernel(x_ref, wb_ref, bb_ref, w1_ref, b1_ref, ws_ref, bs_ref,
                      w2_ref, b2_ref, wfa_ref, wfb_ref, bf_ref, o_ref):
    # base_layer: 3x3 conv (patch rows) + folded-BN bias + Mish
    base = _mish_f32(
        jnp.dot(x_ref[...], wb_ref[...], preferred_element_type=jnp.float32)
        + bb_ref[...]).astype(jnp.bfloat16)

    # partial_transition1
    out1 = _mish_f32(
        jnp.dot(base, w1_ref[...], preferred_element_type=jnp.float32)
        + b1_ref[...])

    # TODO(synk): stage_layers is an injected nn.Module in the reference; a
    # single 1x1 ConvNormActivation stands in for the real DarkBlock stack.
    out2 = _mish_f32(
        jnp.dot(base, ws_ref[...], preferred_element_type=jnp.float32)
        + bs_ref[...])

    # partial_transition2
    out2 = _mish_f32(
        jnp.dot(out2.astype(jnp.bfloat16), w2_ref[...],
                preferred_element_type=jnp.float32) + b2_ref[...])

    # torch.cat([out2, out1], dim=1) + 1x1 fuse conv  ==  split-K matmul
    fuse = (jnp.dot(out2.astype(jnp.bfloat16), wfa_ref[...],
                    preferred_element_type=jnp.float32)
            + jnp.dot(out1.astype(jnp.bfloat16), wfb_ref[...],
                      preferred_element_type=jnp.float32)
            + bf_ref[...])
    o_ref[...] = _mish_f32(fuse).astype(o_ref.dtype)


def _resident_spec(shape):
    """Full-array, constant-index BlockSpec; single-buffered when supported."""
    idx = lambda i: (0,) * len(shape)
    try:
        return pl.BlockSpec(shape, idx, pipeline_mode=pl.Buffered(1))
    except (TypeError, AttributeError):
        return pl.BlockSpec(shape, idx)


def _pick_tile_m(M, K, inter_cols, n_out, resident_bytes):
    budget = _vmem_budget_bytes()
    # big tiles on 128 MiB parts (v5e/v6e), smaller on 64 MiB (v7x)
    tm = 2048 if budget >= 80 * 1024 * 1024 else 1024
    if M >= 64:
        # keep >= 2 M-tiles so v7x's two TensorCores both get work
        tm = min(tm, _round_up((M + 1) // 2, 16))
    tm = min(tm, _round_up(M, 16))
    tm = max(16, _round_up(tm, 16))

    def tile_bytes(t):
        act = 2 * t * K * 2          # bf16 activation tile, double-buffered
        out = 2 * t * n_out * 2      # bf16 output tile, double-buffered
        inter = t * inter_cols * 4   # f32 intermediates / accumulators
        return act + out + inter

    while tm > 16 and resident_bytes + tile_bytes(tm) > budget // 2:
        tm = _round_up(tm // 2, 16)
    return tm


def _csp_fused_call(x2d, wb, bb, w1, b1, ws, bs, w2, b2, wfa, wfb, bf):
    M, K = x2d.shape
    n_out = wfa.shape[1]
    weights = (wb, bb, w1, b1, ws, bs, w2, b2, wfa, wfb, bf)

    resident_bytes = sum(int(a.size) * a.dtype.itemsize for a in weights)
    inter_cols = wb.shape[1] + 2 * w1.shape[1] + n_out
    tm = _pick_tile_m(M, K, inter_cols, n_out, resident_bytes)

    in_specs = [pl.BlockSpec((tm, K), lambda i: (i, 0))]
    in_specs += [_resident_spec(a.shape) for a in weights]

    return pl.pallas_call(
        _csp_fused_kernel,
        out_shape=jax.ShapeDtypeStruct((M, n_out), jnp.bfloat16),
        grid=(pl.cdiv(M, tm),),
        in_specs=in_specs,
        out_specs=pl.BlockSpec((tm, n_out), lambda i: (i, 0)),
        compiler_params=pltpu.CompilerParams(
            dimension_semantics=("parallel",),
            vmem_limit_bytes=_vmem_budget_bytes()),
    )(x2d, *weights)


# ---------------------------------------------------------------------------
# Glue: bf16 patch extraction for the 3x3 base conv, BN-folded weight packing
# ---------------------------------------------------------------------------
def _im2col_3x3(x_nhwc, stride, dilation):
    n, h, w, c = x_nhwc.shape
    pad = dilation
    xp = jnp.pad(x_nhwc, ((0, 0), (pad, pad), (pad, pad), (0, 0)))
    ho = (h + 2 * pad - dilation * 2 - 1) // stride + 1
    wo = (w + 2 * pad - dilation * 2 - 1) // stride + 1
    taps = []
    for kh in range(3):
        for kw in range(3):
            sl = xp[:,
                    kh * dilation: kh * dilation + stride * (ho - 1) + 1: stride,
                    kw * dilation: kw * dilation + stride * (wo - 1) + 1: stride,
                    :]
            taps.append(sl)
    # feature ordering (kh, kw, c) matches the base weight reshape below
    x2d = jnp.concatenate(taps, axis=-1).reshape(n * ho * wo, 9 * c)
    return x2d, ho, wo


def _fold_1x1(p, k_pad, n_pad):
    """(O,I,1,1) conv + BN -> bf16 (k_pad, n_pad) weight, f32 (1, n_pad) bias."""
    o, i = p["w"].shape[:2]
    w2d = p["w"].reshape(o, i).T * p["scale"][None, :]
    w2d = jnp.pad(w2d, ((0, k_pad - i), (0, n_pad - o)))
    b = jnp.pad(p["bias"], (0, n_pad - o)).reshape(1, n_pad)
    return w2d.astype(jnp.bfloat16), b.astype(jnp.float32)


# ---------------------------------------------------------------------------
# Parameter construction (deterministic, synthetic; BN folded at build time)
# ---------------------------------------------------------------------------
def _make_conv_bn(key, cin, cout, ksize, eps=1e-4):
    k1, k2, k3, k4, k5 = jax.random.split(key, 5)
    w = jax.random.normal(k1, (cout, cin, ksize, ksize), jnp.float32) * 0.1
    gamma = 1.0 + 0.1 * jax.random.normal(k2, (cout,), jnp.float32)
    beta = 0.1 * jax.random.normal(k3, (cout,), jnp.float32)
    run_mean = 0.05 * jax.random.normal(k4, (cout,), jnp.float32)
    run_var = 0.5 + jnp.abs(jax.random.normal(k5, (cout,), jnp.float32))
    scale = gamma / jnp.sqrt(run_var + eps)      # inference-mode BN fold
    bias = beta - run_mean * scale
    return {"w": w, "scale": scale, "bias": bias}


def make_csp_params(key, inplanes, planes, is_csp_first_stage):
    ks = jax.random.split(key, 5)
    pt_ch = planes if is_csp_first_stage else inplanes
    fuse_in = planes * 2 if is_csp_first_stage else planes
    return {
        "base": _make_conv_bn(ks[0], inplanes, planes, 3),
        "pt1": _make_conv_bn(ks[1], planes, pt_ch, 1),
        # stand-in for the injected stage_layers module (see TODO in kernel)
        "stage": _make_conv_bn(ks[2], planes, pt_ch, 1),
        "pt2": _make_conv_bn(ks[3], pt_ch, pt_ch, 1),
        "fuse": _make_conv_bn(ks[4], fuse_in, planes, 1),
    }


# ---------------------------------------------------------------------------
# CrossStagePartialBlock forward
# ---------------------------------------------------------------------------
@functools.partial(jax.jit, static_argnames=("stride", "dilation"))
def csp_block_forward(x_nchw, params, stride=2, dilation=1):
    x = jnp.transpose(x_nchw, (0, 2, 3, 1)).astype(jnp.bfloat16)  # NCHW -> NHWC
    n, h, w, cin = x.shape

    pb = params["base"]
    planes = pb["w"].shape[0]
    pt_ch = params["pt1"]["w"].shape[0]
    out_ch = params["fuse"]["w"].shape[0]

    # channel dims padded to multiples of 128 (lane-dense stores, full MXU width)
    pp = _round_up(planes, 128)
    ptp = _round_up(pt_ch, 128)
    outp = _round_up(out_ch, 128)

    # 3x3 base conv patch rows (bf16)
    x2d, ho, wo = _im2col_3x3(x, stride, dilation)

    # base weight (O,I,3,3) -> (9*I, O) with BN scale folded, N padded to pp
    wb = (jnp.transpose(pb["w"], (2, 3, 1, 0)).reshape(9 * cin, planes)
          * pb["scale"][None, :])
    wb = jnp.pad(wb, ((0, 0), (0, pp - planes))).astype(jnp.bfloat16)
    bb = jnp.pad(pb["bias"], (0, pp - planes)).reshape(1, pp).astype(jnp.float32)

    w1, b1 = _fold_1x1(params["pt1"], pp, ptp)
    ws, bs = _fold_1x1(params["stage"], pp, ptp)
    w2, b2 = _fold_1x1(params["pt2"], ptp, ptp)

    pf = params["fuse"]
    fo, fi = pf["w"].shape[:2]
    wf = pf["w"].reshape(fo, fi).T * pf["scale"][None, :]          # (fi, fo)
    wfa = jnp.pad(wf[:pt_ch],
                  ((0, ptp - pt_ch), (0, outp - fo))).astype(jnp.bfloat16)
    wfb = jnp.pad(wf[pt_ch:],
                  ((0, ptp - (fi - pt_ch)), (0, outp - fo))).astype(jnp.bfloat16)
    bf = jnp.pad(pf["bias"], (0, outp - fo)).reshape(1, outp).astype(jnp.float32)

    out2d = _csp_fused_call(x2d, wb, bb, w1, b1, ws, bs, w2, b2, wfa, wfb, bf)

    # slice off channel padding; it fuses with the NHWC->NCHW transpose + cast
    out = out2d[:, :out_ch].reshape(n, ho, wo, out_ch)
    return jnp.transpose(out, (0, 3, 1, 2)).astype(jnp.float32)


# ---------------------------------------------------------------------------
# Pure-JAX reference (for a loose parity check in __main__)
# ---------------------------------------------------------------------------
def _reference_forward(x_nchw, params, stride=2, dilation=1):
    def conv_bn_mish(x, p, s, pad, d):
        y = jax.lax.conv_general_dilated(
            x, p["w"], window_strides=(s, s),
            padding=[(pad, pad), (pad, pad)], rhs_dilation=(d, d),
            dimension_numbers=("NCHW", "OIHW", "NCHW"))
        y = y * p["scale"][None, :, None, None] + p["bias"][None, :, None, None]
        sp = jnp.where(y > 20.0, y, jnp.log1p(jnp.exp(jnp.minimum(y, 20.0))))
        return y * jnp.tanh(sp)

    xb = conv_bn_mish(x_nchw, params["base"], stride, dilation, dilation)
    out1 = conv_bn_mish(xb, params["pt1"], 1, 0, 1)
    out2 = conv_bn_mish(xb, params["stage"], 1, 0, 1)
    out2 = conv_bn_mish(out2, params["pt2"], 1, 0, 1)
    out = jnp.concatenate([out2, out1], axis=1)
    return conv_bn_mish(out, params["fuse"], 1, 0, 1)


if __name__ == "__main__":
    key = jax.random.PRNGKey(0)
    k_in, k_par = jax.random.split(key)

    # Small shapes: batch=2, inplanes=4, planes=8, spatial=16, first CSP stage.
    inplanes, planes = 4, 8
    x = jax.random.normal(k_in, (2, inplanes, 16, 16), jnp.float32)
    params = make_csp_params(k_par, inplanes, planes, is_csp_first_stage=True)

    out = csp_block_forward(x, params, stride=2, dilation=1)
    out = jax.block_until_ready(out)

    assert out.shape == (2, planes, 8, 8), out.shape
    assert bool(jnp.all(jnp.isfinite(out)))

    # Loose parity vs. a pure-JAX f32 reference (kernel runs in bf16).
    ref = _reference_forward(x, params, stride=2, dilation=1)
    max_err = float(jnp.max(jnp.abs(out - ref)))
    assert bool(jnp.allclose(out, ref, rtol=0.05, atol=0.05)), max_err

    print("KERNEL_OK")
</pallas_src>

<mosaic_0001>
module attributes {stable_mosaic.version = 11 : i64} {
  func.func @_csp_fused_kernel(%arg0: i32, %arg1: memref<64x36xbf16, #tpu.memory_space<vmem>>, %arg2: memref<36x128xbf16, #tpu.memory_space<vmem>>, %arg3: memref<1x128xf32, #tpu.memory_space<vmem>>, %arg4: memref<128x128xbf16, #tpu.memory_space<vmem>>, %arg5: memref<1x128xf32, #tpu.memory_space<vmem>>, %arg6: memref<128x128xbf16, #tpu.memory_space<vmem>>, %arg7: memref<1x128xf32, #tpu.memory_space<vmem>>, %arg8: memref<128x128xbf16, #tpu.memory_space<vmem>>, %arg9: memref<1x128xf32, #tpu.memory_space<vmem>>, %arg10: memref<128x128xbf16, #tpu.memory_space<vmem>>, %arg11: memref<128x128xbf16, #tpu.memory_space<vmem>>, %arg12: memref<1x128xf32, #tpu.memory_space<vmem>>, %arg13: memref<64x128xbf16, #tpu.memory_space<vmem>>) attributes {dimension_semantics = [#tpu.dimension_semantics<parallel>], iteration_bounds = array<i64: 2>, scalar_prefetch = 0 : i64, scratch_operands = 0 : i64, tpu.core_type = #tpu.core_type<tc>, window_params = [{transform_indices = @transform_0, window_bounds = array<i64: 64, 36>}, {pipeline_mode = #tpu.pipeline_mode<synchronous>, transform_indices = @transform_1, window_bounds = array<i64: 36, 128>}, {pipeline_mode = #tpu.pipeline_mode<synchronous>, transform_indices = @transform_2, window_bounds = array<i64: 1, 128>}, {pipeline_mode = #tpu.pipeline_mode<synchronous>, transform_indices = @transform_3, window_bounds = array<i64: 128, 128>}, {pipeline_mode = #tpu.pipeline_mode<synchronous>, transform_indices = @transform_4, window_bounds = array<i64: 1, 128>}, {pipeline_mode = #tpu.pipeline_mode<synchronous>, transform_indices = @transform_5, window_bounds = array<i64: 128, 128>}, {pipeline_mode = #tpu.pipeline_mode<synchronous>, transform_indices = @transform_6, window_bounds = array<i64: 1, 128>}, {pipeline_mode = #tpu.pipeline_mode<synchronous>, transform_indices = @transform_7, window_bounds = array<i64: 128, 128>}, {pipeline_mode = #tpu.pipeline_mode<synchronous>, transform_indices = @transform_8, window_bounds = array<i64: 1, 128>}, {pipeline_mode = #tpu.pipeline_mode<synchronous>, transform_indices = @transform_9, window_bounds = array<i64: 128, 128>}, {pipeline_mode = #tpu.pipeline_mode<synchronous>, transform_indices = @transform_10, window_bounds = array<i64: 128, 128>}, {pipeline_mode = #tpu.pipeline_mode<synchronous>, transform_indices = @transform_11, window_bounds = array<i64: 1, 128>}, {transform_indices = @transform_12, window_bounds = array<i64: 64, 128>}]} {
    %c0 = arith.constant 0 : index
    %c0_0 = arith.constant 0 : index
    %0 = vector.load %arg1[%c0, %c0_0] : memref<64x36xbf16, #tpu.memory_space<vmem>>, vector<64x36xbf16>
    %c0_1 = arith.constant 0 : index
    %c0_2 = arith.constant 0 : index
    %1 = vector.load %arg2[%c0_1, %c0_2] : memref<36x128xbf16, #tpu.memory_space<vmem>>, vector<36x128xbf16>
    %cst = arith.constant dense<0.000000e+00> : vector<64x128xf32>
    %2 = tpu.matmul %0, %1, %cst {dimension_numbers = #tpu.dot_dimension_numbers<[1], [0], [0], [1], [0, 0, 1, 1], [], []>} : vector<64x36xbf16>, vector<36x128xbf16>, vector<64x128xf32> -> vector<64x128xf32>
    %c0_3 = arith.constant 0 : index
    %c0_4 = arith.constant 0 : index
    %3 = vector.load %arg3[%c0_3, %c0_4] : memref<1x128xf32, #tpu.memory_space<vmem>>, vector<1x128xf32>
    %4 = vector.broadcast %3 : vector<1x128xf32> to vector<64x128xf32>
    %5 = arith.addf %2, %4 : vector<64x128xf32>
    %cst_5 = arith.constant 2.000000e+01 : f32
    %6 = vector.broadcast %cst_5 : f32 to vector<64x128xf32>
    %7 = arith.minimumf %5, %6 : vector<64x128xf32>
    %8 = math.exp %7 : vector<64x128xf32>
    %cst_6 = arith.constant 2.000000e+00 : f32
    %9 = vector.broadcast %cst_6 : f32 to vector<64x128xf32>
    %10 = arith.addf %8, %9 : vector<64x128xf32>
    %11 = arith.mulf %8, %10 : vector<64x128xf32>
    %cst_7 = arith.constant 2.000000e+00 : f32
    %12 = vector.broadcast %cst_7 : f32 to vector<64x128xf32>
    %13 = arith.addf %11, %12 : vector<64x128xf32>
    %14 = arith.divf %11, %13 : vector<64x128xf32>
    %cst_8 = arith.constant 2.000000e+01 : f32
    %15 = vector.broadcast %cst_8 : f32 to vector<64x128xf32>
    %16 = arith.cmpf ogt, %5, %15 : vector<64x128xf32>
    %17 = arith.mulf %5, %14 : vector<64x128xf32>
    %18 = arith.select %16, %5, %17 : vector<64x128xi1>, vector<64x128xf32>
    %19 = arith.truncf %18 : vector<64x128xf32> to vector<64x128xbf16>
    %c0_9 = arith.constant 0 : index
    %c0_10 = arith.constant 0 : index
    %20 = vector.load %arg4[%c0_9, %c0_10] : memref<128x128xbf16, #tpu.memory_space<vmem>>, vector<128x128xbf16>
    %cst_11 = arith.constant dense<0.000000e+00> : vector<64x128xf32>
    %21 = tpu.matmul %19, %20, %cst_11 {dimension_numbers = #tpu.dot_dimension_numbers<[1], [0], [0], [1], [0, 0, 1, 1], [], []>} : vector<64x128xbf16>, vector<128x128xbf16>, vector<64x128xf32> -> vector<64x128xf32>
    %c0_12 = arith.constant 0 : index
    %c0_13 = arith.constant 0 : index
    %22 = vector.load %arg5[%c0_12, %c0_13] : memref<1x128xf32, #tpu.memory_space<vmem>>, vector<1x128xf32>
    %23 = vector.broadcast %22 : vector<1x128xf32> to vector<64x128xf32>
    %24 = arith.addf %21, %23 : vector<64x128xf32>
    %cst_14 = arith.constant 2.000000e+01 : f32
    %25 = vector.broadcast %cst_14 : f32 to vector<64x128xf32>
    %26 = arith.minimumf %24, %25 : vector<64x128xf32>
    %27 = math.exp %26 : vector<64x128xf32>
    %cst_15 = arith.constant 2.000000e+00 : f32
    %28 = vector.broadcast %cst_15 : f32 to vector<64x128xf32>
    %29 = arith.addf %27, %28 : vector<64x128xf32>
    %30 = arith.mulf %27, %29 : vector<64x128xf32>
    %cst_16 = arith.constant 2.000000e+00 : f32
    %31 = vector.broadcast %cst_16 : f32 to vector<64x128xf32>
    %32 = arith.addf %30, %31 : vector<64x128xf32>
    %33 = arith.divf %30, %32 : vector<64x128xf32>
    %cst_17 = arith.constant 2.000000e+01 : f32
    %34 = vector.broadcast %cst_17 : f32 to vector<64x128xf32>
    %35 = arith.cmpf ogt, %24, %34 : vector<64x128xf32>
    %36 = arith.mulf %24, %33 : vector<64x128xf32>
    %37 = arith.select %35, %24, %36 : vector<64x128xi1>, vector<64x128xf32>
    %c0_18 = arith.constant 0 : index
    %c0_19 = arith.constant 0 : index
    %38 = vector.load %arg6[%c0_18, %c0_19] : memref<128x128xbf16, #tpu.memory_space<vmem>>, vector<128x128xbf16>
    %cst_20 = arith.constant dense<0.000000e+00> : vector<64x128xf32>
    %39 = tpu.matmul %19, %38, %cst_20 {dimension_numbers = #tpu.dot_dimension_numbers<[1], [0], [0], [1], [0, 0, 1, 1], [], []>} : vector<64x128xbf16>, vector<128x128xbf16>, vector<64x128xf32> -> vector<64x128xf32>
    %c0_21 = arith.constant 0 : index
    %c0_22 = arith.constant 0 : index
    %40 = vector.load %arg7[%c0_21, %c0_22] : memref<1x128xf32, #tpu.memory_space<vmem>>, vector<1x128xf32>
    %41 = vector.broadcast %40 : vector<1x128xf32> to vector<64x128xf32>
    %42 = arith.addf %39, %41 : vector<64x128xf32>
    %cst_23 = arith.constant 2.000000e+01 : f32
    %43 = vector.broadcast %cst_23 : f32 to vector<64x128xf32>
    %44 = arith.minimumf %42, %43 : vector<64x128xf32>
    %45 = math.exp %44 : vector<64x128xf32>
    %cst_24 = arith.constant 2.000000e+00 : f32
    %46 = vector.broadcast %cst_24 : f32 to vector<64x128xf32>
    %47 = arith.addf %45, %46 : vector<64x128xf32>
    %48 = arith.mulf %45, %47 : vector<64x128xf32>
    %cst_25 = arith.constant 2.000000e+00 : f32
    %49 = vector.broadcast %cst_25 : f32 to vector<64x128xf32>
    %50 = arith.addf %48, %49 : vector<64x128xf32>
    %51 = arith.divf %48, %50 : vector<64x128xf32>
    %cst_26 = arith.constant 2.000000e+01 : f32
    %52 = vector.broadcast %cst_26 : f32 to vector<64x128xf32>
    %53 = arith.cmpf ogt, %42, %52 : vector<64x128xf32>
    %54 = arith.mulf %42, %51 : vector<64x128xf32>
    %55 = arith.select %53, %42, %54 : vector<64x128xi1>, vector<64x128xf32>
    %56 = arith.truncf %55 : vector<64x128xf32> to vector<64x128xbf16>
    %c0_27 = arith.constant 0 : index
    %c0_28 = arith.constant 0 : index
    %57 = vector.load %arg8[%c0_27, %c0_28] : memref<128x128xbf16, #tpu.memory_space<vmem>>, vector<128x128xbf16>
    %cst_29 = arith.constant dense<0.000000e+00> : vector<64x128xf32>
    %58 = tpu.matmul %56, %57, %cst_29 {dimension_numbers = #tpu.dot_dimension_numbers<[1], [0], [0], [1], [0, 0, 1, 1], [], []>} : vector<64x128xbf16>, vector<128x128xbf16>, vector<64x128xf32> -> vector<64x128xf32>
    %c0_30 = arith.constant 0 : index
    %c0_31 = arith.constant 0 : index
    %59 = vector.load %arg9[%c0_30, %c0_31] : memref<1x128xf32, #tpu.memory_space<vmem>>, vector<1x128xf32>
    %60 = vector.broadcast %59 : vector<1x128xf32> to vector<64x128xf32>
    %61 = arith.addf %58, %60 : vector<64x128xf32>
    %cst_32 = arith.constant 2.000000e+01 : f32
    %62 = vector.broadcast %cst_32 : f32 to vector<64x128xf32>
    %63 = arith.minimumf %61, %62 : vector<64x128xf32>
    %64 = math.exp %63 : vector<64x128xf32>
    %cst_33 = arith.constant 2.000000e+00 : f32
    %65 = vector.broadcast %cst_33 : f32 to vector<64x128xf32>
    %66 = arith.addf %64, %65 : vector<64x128xf32>
    %67 = arith.mulf %64, %66 : vector<64x128xf32>
    %cst_34 = arith.constant 2.000000e+00 : f32
    %68 = vector.broadcast %cst_34 : f32 to vector<64x128xf32>
    %69 = arith.addf %67, %68 : vector<64x128xf32>
    %70 = arith.divf %67, %69 : vector<64x128xf32>
    %cst_35 = arith.constant 2.000000e+01 : f32
    %71 = vector.broadcast %cst_35 : f32 to vector<64x128xf32>
    %72 = arith.cmpf ogt, %61, %71 : vector<64x128xf32>
    %73 = arith.mulf %61, %70 : vector<64x128xf32>
    %74 = arith.select %72, %61, %73 : vector<64x128xi1>, vector<64x128xf32>
    %75 = arith.truncf %74 : vector<64x128xf32> to vector<64x128xbf16>
    %c0_36 = arith.constant 0 : index
    %c0_37 = arith.constant 0 : index
    %76 = vector.load %arg10[%c0_36, %c0_37] : memref<128x128xbf16, #tpu.memory_space<vmem>>, vector<128x128xbf16>
    %cst_38 = arith.constant dense<0.000000e+00> : vector<64x128xf32>
    %77 = tpu.matmul %75, %76, %cst_38 {dimension_numbers = #tpu.dot_dimension_numbers<[1], [0], [0], [1], [0, 0, 1, 1], [], []>} : vector<64x128xbf16>, vector<128x128xbf16>, vector<64x128xf32> -> vector<64x128xf32>
    %78 = arith.truncf %37 : vector<64x128xf32> to vector<64x128xbf16>
    %c0_39 = arith.constant 0 : index
    %c0_40 = arith.constant 0 : index
    %79 = vector.load %arg11[%c0_39, %c0_40] : memref<128x128xbf16, #tpu.memory_space<vmem>>, vector<128x128xbf16>
    %cst_41 = arith.constant dense<0.000000e+00> : vector<64x128xf32>
    %80 = tpu.matmul %78, %79, %cst_41 {dimension_numbers = #tpu.dot_dimension_numbers<[1], [0], [0], [1], [0, 0, 1, 1], [], []>} : vector<64x128xbf16>, vector<128x128xbf16>, vector<64x128xf32> -> vector<64x128xf32>
    %81 = arith.addf %77, %80 : vector<64x128xf32>
    %c0_42 = arith.constant 0 : index
    %c0_43 = arith.constant 0 : index
    %82 = vector.load %arg12[%c0_42, %c0_43] : memref<1x128xf32, #tpu.memory_space<vmem>>, vector<1x128xf32>
    %83 = vector.broadcast %82 : vector<1x128xf32> to vector<64x128xf32>
    %84 = arith.addf %81, %83 : vector<64x128xf32>
    %cst_44 = arith.constant 2.000000e+01 : f32
    %85 = vector.broadcast %cst_44 : f32 to vector<64x128xf32>
    %86 = arith.minimumf %84, %85 : vector<64x128xf32>
    %87 = math.exp %86 : vector<64x128xf32>
    %cst_45 = arith.constant 2.000000e+00 : f32
    %88 = vector.broadcast %cst_45 : f32 to vector<64x128xf32>
    %89 = arith.addf %87, %88 : vector<64x128xf32>
    %90 = arith.mulf %87, %89 : vector<64x128xf32>
    %cst_46 = arith.constant 2.000000e+00 : f32
    %91 = vector.broadcast %cst_46 : f32 to vector<64x128xf32>
    %92 = arith.addf %90, %91 : vector<64x128xf32>
    %93 = arith.divf %90, %92 : vector<64x128xf32>
    %cst_47 = arith.constant 2.000000e+01 : f32
    %94 = vector.broadcast %cst_47 : f32 to vector<64x128xf32>
    %95 = arith.cmpf ogt, %84, %94 : vector<64x128xf32>
    %96 = arith.mulf %84, %93 : vector<64x128xf32>
    %97 = arith.select %95, %84, %96 : vector<64x128xi1>, vector<64x128xf32>
    %98 = arith.truncf %97 : vector<64x128xf32> to vector<64x128xbf16>
    %c0_48 = arith.constant 0 : index
    %c0_49 = arith.constant 0 : index
    %99 = vector.load %arg13[%c0_48, %c0_49] : memref<64x128xbf16, #tpu.memory_space<vmem>>, vector<64x128xbf16>
    tpu.vector_store %arg13[%c0_48, %c0_49], %98 {strides = array<i32>} : memref<64x128xbf16, #tpu.memory_space<vmem>>, vector<64x128xbf16>,
    return
  }
  func.func @transform_0(%arg0: i32) -> (i32, i32) {
    %c0_i32 = arith.constant 0 : i32
    %c0_i32_0 = arith.constant 0 : i32
    return %arg0, %c0_i32 : i32, i32
  }
  func.func @transform_1(%arg0: i32) -> (i32, i32) {
    %c0_i32 = arith.constant 0 : i32
    %c0_i32_0 = arith.constant 0 : i32
    %c0_i32_1 = arith.constant 0 : i32
    return %c0_i32, %c0_i32_0 : i32, i32
  }
  func.func @transform_2(%arg0: i32) -> (i32, i32) {
    %c0_i32 = arith.constant 0 : i32
    %c0_i32_0 = arith.constant 0 : i32
    %c0_i32_1 = arith.constant 0 : i32
    return %c0_i32, %c0_i32_0 : i32, i32
  }
  func.func @transform_3(%arg0: i32) -> (i32, i32) {
    %c0_i32 = arith.constant 0 : i32
    %c0_i32_0 = arith.constant 0 : i32
    %c0_i32_1 = arith.constant 0 : i32
    return %c0_i32, %c0_i32_0 : i32, i32
  }
  func.func @transform_4(%arg0: i32) -> (i32, i32) {
    %c0_i32 = arith.constant 0 : i32
    %c0_i32_0 = arith.constant 0 : i32
    %c0_i32_1 = arith.constant 0 : i32
    return %c0_i32, %c0_i32_0 : i32, i32
  }
  func.func @transform_5(%arg0: i32) -> (i32, i32) {
    %c0_i32 = arith.constant 0 : i32
    %c0_i32_0 = arith.constant 0 : i32
    %c0_i32_1 = arith.constant 0 : i32
    return %c0_i32, %c0_i32_0 : i32, i32
  }
  func.func @transform_6(%arg0: i32) -> (i32, i32) {
    %c0_i32 = arith.constant 0 : i32
    %c0_i32_0 = arith.constant 0 : i32
    %c0_i32_1 = arith.constant 0 : i32
    return %c0_i32, %c0_i32_0 : i32, i32
  }
  func.func @transform_7(%arg0: i32) -> (i32, i32) {
    %c0_i32 = arith.constant 0 : i32
    %c0_i32_0 = arith.constant 0 : i32
    %c0_i32_1 = arith.constant 0 : i32
    return %c0_i32, %c0_i32_0 : i32, i32
  }
  func.func @transform_8(%arg0: i32) -> (i32, i32) {
    %c0_i32 = arith.constant 0 : i32
    %c0_i32_0 = arith.constant 0 : i32
    %c0_i32_1 = arith.constant 0 : i32
    return %c0_i32, %c0_i32_0 : i32, i32
  }
  func.func @transform_9(%arg0: i32) -> (i32, i32) {
    %c0_i32 = arith.constant 0 : i32
    %c0_i32_0 = arith.constant 0 : i32
    %c0_i32_1 = arith.constant 0 : i32
    return %c0_i32, %c0_i32_0 : i32, i32
  }
  func.func @transform_10(%arg0: i32) -> (i32, i32) {
    %c0_i32 = arith.constant 0 : i32
    %c0_i32_0 = arith.constant 0 : i32
    %c0_i32_1 = arith.constant 0 : i32
    return %c0_i32, %c0_i32_0 : i32, i32
  }
  func.func @transform_11(%arg0: i32) -> (i32, i32) {
    %c0_i32 = arith.constant 0 : i32
    %c0_i32_0 = arith.constant 0 : i32
    %c0_i32_1 = arith.constant 0 : i32
    return %c0_i32, %c0_i32_0 : i32, i32
  }
  func.func @transform_12(%arg0: i32) -> (i32, i32) {
    %c0_i32 = arith.constant 0 : i32
    %c0_i32_0 = arith.constant 0 : i32
    return %arg0, %c0_i32 : i32, i32
  }
}

</mosaic_0001>

<llo_original>
// kernel: csp_block_forward.1
$region0: #{csp_block_forward.1}
  #allocation0 [shape = 'u32[]', space=smem, size = 0x4, offset = 0x4, fixed_abs, tag = 'smem constant byte address 0x4 - core index']
  #allocation1 [shape = 'u32[144,128]{1,0:T(1,128)}', space=vmem, size = 0x12000, scoped, tag = 'internal scratch']
  %s0 = inlined_call_operand.vmem [shape: bf16[128,36], index: 0, kind: input, shape index: {}]
  %s1 = inlined_call_operand.vmem [shape: bf16[36,128], index: 1, kind: input, shape index: {}]
  %s2 = inlined_call_operand.vmem [shape: f32[1,128], index: 2, kind: input, shape index: {}]
  %s3 = inlined_call_operand.vmem [shape: bf16[128,128], index: 3, kind: input, shape index: {}]
  %s4 = inlined_call_operand.vmem [shape: f32[1,128], index: 4, kind: input, shape index: {}]
  %s5 = inlined_call_operand.vmem [shape: bf16[128,128], index: 5, kind: input, shape index: {}]
  %s6 = inlined_call_operand.vmem [shape: f32[1,128], index: 6, kind: input, shape index: {}]
  %s7 = inlined_call_operand.vmem [shape: bf16[128,128], index: 7, kind: input, shape index: {}]
  %s8 = inlined_call_operand.vmem [shape: f32[1,128], index: 8, kind: input, shape index: {}]
  %s9 = inlined_call_operand.vmem [shape: bf16[128,128], index: 9, kind: input, shape index: {}]
  %s10 = inlined_call_operand.vmem [shape: bf16[128,128], index: 10, kind: input, shape index: {}]
  %s11 = inlined_call_operand.vmem [shape: f32[1,128], index: 11, kind: input, shape index: {}]
  %s12 = inlined_call_operand.vmem [shape: bf16[128,128], index: 12, kind: output, shape index: {}]
  %s13 = sld [smem:[#allocation0]]
  $region81: #{csp_block_forward.1} parent=0
    _
  %s15 = ssub.s32 1, %s13
  %s16 = scalar_select 0, %s15, %s13
  loop: start=0, step=1, limit=4
  $region2: #{csp_block_forward.1} parent=0 // loop_pre_header
    _
  $region3: #{csp_block_forward.1} parent=0 // loop_header
    %s18 = sphi 0, %s22
    %p19 = scmp.ge.s32.totalorder %s18, 4
    %s28 = sphi 0, %s30
    %s31 = sphi 0, %s28
    %s32 = sphi 0, %s31
    %s48 = sphi 0, %s32
    %s52 = sphi 0, %s52
    %s54 = sphi 0, %s52
    %s55 = sphi 0, %s54
    %s69 = sphi 0, %s55
    %s73 = sphi 0, %s73
    %s75 = sphi 0, %s73
    %s76 = sphi 0, %s75
    %s90 = sphi 0, %s76
    %s94 = sphi 0, %s94
    %s96 = sphi 0, %s94
    %s97 = sphi 0, %s96
    %s111 = sphi 0, %s97
    %s115 = sphi 0, %s115
    %s117 = sphi 0, %s115
    %s118 = sphi 0, %s117
    %s132 = sphi 0, %s118
    %s136 = sphi 0, %s136
    %s138 = sphi 0, %s136
    %s139 = sphi 0, %s138
    %s153 = sphi 0, %s139
    %s157 = sphi 0, %s157
    %s159 = sphi 0, %s157
    %s160 = sphi 0, %s159
    %s174 = sphi 0, %s160
    %s178 = sphi 0, %s178
    %s180 = sphi 0, %s178
    %s181 = sphi 0, %s180
    %s195 = sphi 0, %s181
    %s199 = sphi 0, %s199
    %s201 = sphi 0, %s199
    %s202 = sphi 0, %s201
    %s216 = sphi 0, %s202
    %s220 = sphi 0, %s220
    %s222 = sphi 0, %s220
    %s223 = sphi 0, %s222
    %s237 = sphi 0, %s223
    %s241 = sphi 0, %s241
    %s243 = sphi 0, %s241
    %s244 = sphi 0, %s243
    %s258 = sphi 0, %s244
    %s262 = sphi 0, %s262
    %s264 = sphi 0, %s262
    %s265 = sphi 0, %s264
    %s279 = sphi 0, %s265
    %s285 = sphi 0, %s287
    %s288 = sphi 0, %s285
    %s289 = sphi 0, %s288
    %s305 = sphi 0, %s289
  $region4: #{csp_block_forward.1} parent=0 // loop_header_branch
    %21 = sbr.rel (%p19) target = $region8
  $region5: #{csp_block_forward.1} parent=0 // loop_body
    %s23 = ssub.s32 %s18, 1
    %s24 = ssub.s32 %s18, 2
    %s25 = sadd.s32 %s18, 1
    %s26 = ssub.s32 %s18, %s25
    %p27 = scmp.eq.s32.totalorder %s26, 0
    %s29 = sadd.s32 %s28, 1
    %s30 = scalar_select %p27, %s28, %s29
    %p33 = pneg %p27
    %p34 = scmp.eq.s32.totalorder %s18, 1
    %p35 = por %p33, %p34
    %p36 = scmp.ne.s32.totalorder %s28, %s31
    %p37 = scmp.eq.s32.totalorder %s18, 0
    %p38 = por %p36, %p37
    %p39 = scmp.ne.s32.totalorder %s28, %s31
    %p40 = scmp.eq.s32.totalorder %s23, 1
    %p41 = por %p39, %p40
    %p42 = scmp.ne.s32.totalorder %s31, %s32
    %p43 = scmp.eq.s32.totalorder %s23, 0
    %p44 = por %p42, %p43
    %p45 = scmp.ne.s32.totalorder %s31, %s32
    %p46 = scmp.eq.s32.totalorder %s24, 1
    %p47 = por %p45, %p46
    %p49 = scmp.ne.s32.totalorder %s32, %s48
    %p50 = scmp.eq.s32.totalorder %s24, 0
    %p51 = por %p49, %p50
    %s53 = sadd.s32 %s52, 1
    %p56 = scmp.eq.s32.totalorder %s18, 1
    %p57 = scmp.ne.s32.totalorder %s52, %s54
    %p58 = scmp.eq.s32.totalorder %s18, 0
    %p59 = por %p57, %p58
    %p60 = scmp.ne.s32.totalorder %s52, %s54
    %p61 = scmp.eq.s32.totalorder %s23, 1
    %p62 = por %p60, %p61
    %p63 = scmp.ne.s32.totalorder %s54, %s55
    %p64 = scmp.eq.s32.totalorder %s23, 0
    %p65 = por %p63, %p64
    %p66 = scmp.ne.s32.totalorder %s54, %s55
    %p67 = scmp.eq.s32.totalorder %s24, 1
    %p68 = por %p66, %p67
    %p70 = scmp.ne.s32.totalorder %s55, %s69
    %p71 = scmp.eq.s32.totalorder %s24, 0
    %p72 = por %p70, %p71
    %s74 = sadd.s32 %s73, 1
    %p77 = scmp.eq.s32.totalorder %s18, 1
    %p78 = scmp.ne.s32.totalorder %s73, %s75
    %p79 = scmp.eq.s32.totalorder %s18, 0
    %p80 = por %p78, %p79
    %p81 = scmp.ne.s32.totalorder %s73, %s75
    %p82 = scmp.eq.s32.totalorder %s23, 1
    %p83 = por %p81, %p82
    %p84 = scmp.ne.s32.totalorder %s75, %s76
    %p85 = scmp.eq.s32.totalorder %s23, 0
    %p86 = por %p84, %p85
    %p87 = scmp.ne.s32.totalorder %s75, %s76
    %p88 = scmp.eq.s32.totalorder %s24, 1
    %p89 = por %p87, %p88
    %p91 = scmp.ne.s32.totalorder %s76, %s90
    %p92 = scmp.eq.s32.totalorder %s24, 0
    %p93 = por %p91, %p92
    %s95 = sadd.s32 %s94, 1
    %p98 = scmp.eq.s32.totalorder %s18, 1
    %p99 = scmp.ne.s32.totalorder %s94, %s96
    %p100 = scmp.eq.s32.totalorder %s18, 0
    %p101 = por %p99, %p100
    %p102 = scmp.ne.s32.totalorder %s94, %s96
    %p103 = scmp.eq.s32.totalorder %s23, 1
    %p104 = por %p102, %p103
    %p105 = scmp.ne.s32.totalorder %s96, %s97
    %p106 = scmp.eq.s32.totalorder %s23, 0
    %p107 = por %p105, %p106
    %p108 = scmp.ne.s32.totalorder %s96, %s97
    %p109 = scmp.eq.s32.totalorder %s24, 1
    %p110 = por %p108, %p109
    %p112 = scmp.ne.s32.totalorder %s97, %s111
    %p113 = scmp.eq.s32.totalorder %s24, 0
    %p114 = por %p112, %p113
    %s116 = sadd.s32 %s115, 1
    %p119 = scmp.eq.s32.totalorder %s18, 1
    %p120 = scmp.ne.s32.totalorder %s115, %s117
    %p121 = scmp.eq.s32.totalorder %s18, 0
    %p122 = por %p120, %p121
    %p123 = scmp.ne.s32.totalorder %s115, %s117
    %p124 = scmp.eq.s32.totalorder %s23, 1
    %p125 = por %p123, %p124
    %p126 = scmp.ne.s32.totalorder %s117, %s118
    %p127 = scmp.eq.s32.totalorder %s23, 0
    %p128 = por %p126, %p127
    %p129 = scmp.ne.s32.totalorder %s117, %s118
    %p130 = scmp.eq.s32.totalorder %s24, 1
    %p131 = por %p129, %p130
    %p133 = scmp.ne.s32.totalorder %s118, %s132
    %p134 = scmp.eq.s32.totalorder %s24, 0
    %p135 = por %p133, %p134
    %s137 = sadd.s32 %s136, 1
    %p140 = scmp.eq.s32.totalorder %s18, 1
    %p141 = scmp.ne.s32.totalorder %s136, %s138
    %p142 = scmp.eq.s32.totalorder %s18, 0
    %p143 = por %p141, %p142
    %p144 = scmp.ne.s32.totalorder %s136, %s138
    %p145 = scmp.eq.s32.totalorder %s23, 1
    %p146 = por %p144, %p145
    %p147 = scmp.ne.s32.totalorder %s138, %s139
    %p148 = scmp.eq.s32.totalorder %s23, 0
    %p149 = por %p147, %p148
    %p150 = scmp.ne.s32.totalorder %s138, %s139
    %p151 = scmp.eq.s32.totalorder %s24, 1
    %p152 = por %p150, %p151
    %p154 = scmp.ne.s32.totalorder %s139, %s153
    %p155 = scmp.eq.s32.totalorder %s24, 0
    %p156 = por %p154, %p155
    %s158 = sadd.s32 %s157, 1
    %p161 = scmp.eq.s32.totalorder %s18, 1
    %p162 = scmp.ne.s32.totalorder %s157, %s159
    %p163 = scmp.eq.s32.totalorder %s18, 0
    %p164 = por %p162, %p163
    %p165 = scmp.ne.s32.totalorder %s157, %s159
    %p166 = scmp.eq.s32.totalorder %s23, 1
    %p167 = por %p165, %p166
    %p168 = scmp.ne.s32.totalorder %s159, %s160
    %p169 = scmp.eq.s32.totalorder %s23, 0
    %p170 = por %p168, %p169
    %p171 = scmp.ne.s32.totalorder %s159, %s160
    %p172 = scmp.eq.s32.totalorder %s24, 1
    %p173 = por %p171, %p172
    %p175 = scmp.ne.s32.totalorder %s160, %s174
    %p176 = scmp.eq.s32.totalorder %s24, 0
    %p177 = por %p175, %p176
    %s179 = sadd.s32 %s178, 1
    %p182 = scmp.eq.s32.totalorder %s18, 1
    %p183 = scmp.ne.s32.totalorder %s178, %s180
    %p184 = scmp.eq.s32.totalorder %s18, 0
    %p185 = por %p183, %p184
    %p186 = scmp.ne.s32.totalorder %s178, %s180
    %p187 = scmp.eq.s32.totalorder %s23, 1
    %p188 = por %p186, %p187
    %p189 = scmp.ne.s32.totalorder %s180, %s181
    %p190 = scmp.eq.s32.totalorder %s23, 0
    %p191 = por %p189, %p190
    %p192 = scmp.ne.s32.totalorder %s180, %s181
    %p193 = scmp.eq.s32.totalorder %s24, 1
    %p194 = por %p192, %p193
    %p196 = scmp.ne.s32.totalorder %s181, %s195
    %p197 = scmp.eq.s32.totalorder %s24, 0
    %p198 = por %p196, %p197
    %s200 = sadd.s32 %s199, 1
    %p203 = scmp.eq.s32.totalorder %s18, 1
    %p204 = scmp.ne.s32.totalorder %s199, %s201
    %p205 = scmp.eq.s32.totalorder %s18, 0
    %p206 = por %p204, %p205
    %p207 = scmp.ne.s32.totalorder %s199, %s201
    %p208 = scmp.eq.s32.totalorder %s23, 1
    %p209 = por %p207, %p208
    %p210 = scmp.ne.s32.totalorder %s201, %s202
    %p211 = scmp.eq.s32.totalorder %s23, 0
    %p212 = por %p210, %p211
    %p213 = scmp.ne.s32.totalorder %s201, %s202
    %p214 = scmp.eq.s32.totalorder %s24, 1
    %p215 = por %p213, %p214
    %p217 = scmp.ne.s32.totalorder %s202, %s216
    %p218 = scmp.eq.s32.totalorder %s24, 0
    %p219 = por %p217, %p218
    %s221 = sadd.s32 %s220, 1
    %p224 = scmp.eq.s32.totalorder %s18, 1
    %p225 = scmp.ne.s32.totalorder %s220, %s222
    %p226 = scmp.eq.s32.totalorder %s18, 0
    %p227 = por %p225, %p226
    %p228 = scmp.ne.s32.totalorder %s220, %s222
    %p229 = scmp.eq.s32.totalorder %s23, 1
    %p230 = por %p228, %p229
    %p231 = scmp.ne.s32.totalorder %s222, %s223
    %p232 = scmp.eq.s32.totalorder %s23, 0
    %p233 = por %p231, %p232
    %p234 = scmp.ne.s32.totalorder %s222, %s223
    %p235 = scmp.eq.s32.totalorder %s24, 1
    %p236 = por %p234, %p235
    %p238 = scmp.ne.s32.totalorder %s223, %s237
    %p239 = scmp.eq.s32.totalorder %s24, 0
    %p240 = por %p238, %p239
    %s242 = sadd.s32 %s241, 1
    %p245 = scmp.eq.s32.totalorder %s18, 1
    %p246 = scmp.ne.s32.totalorder %s241, %s243
    %p247 = scmp.eq.s32.totalorder %s18, 0
    %p248 = por %p246, %p247
    %p249 = scmp.ne.s32.totalorder %s241, %s243
    %p250 = scmp.eq.s32.totalorder %s23, 1
    %p251 = por %p249, %p250
    %p252 = scmp.ne.s32.totalorder %s243, %s244
    %p253 = scmp.eq.s32.totalorder %s23, 0
    %p254 = por %p252, %p253
    %p255 = scmp.ne.s32.totalorder %s243, %s244
    %p256 = scmp.eq.s32.totalorder %s24, 1
    %p257 = por %p255, %p256
    %p259 = scmp.ne.s32.totalorder %s244, %s258
    %p260 = scmp.eq.s32.totalorder %s24, 0
    %p261 = por %p259, %p260
    %s263 = sadd.s32 %s262, 1
    %p266 = scmp.eq.s32.totalorder %s18, 1
    %p267 = scmp.ne.s32.totalorder %s262, %s264
    %p268 = scmp.eq.s32.totalorder %s18, 0
    %p269 = por %p267, %p268
    %p270 = scmp.ne.s32.totalorder %s262, %s264
    %p271 = scmp.eq.s32.totalorder %s23, 1
    %p272 = por %p270, %p271
    %p273 = scmp.ne.s32.totalorder %s264, %s265
    %p274 = scmp.eq.s32.totalorder %s23, 0
    %p275 = por %p273, %p274
    %p276 = scmp.ne.s32.totalorder %s264, %s265
    %p277 = scmp.eq.s32.totalorder %s24, 1
    %p278 = por %p276, %p277
    %p280 = scmp.ne.s32.totalorder %s265, %s279
    %p281 = scmp.eq.s32.totalorder %s24, 0
    %p282 = por %p280, %p281
    %s283 = ssub.s32 %s18, %s25
    %p284 = scmp.eq.s32.totalorder %s283, 0
    %s286 = sadd.s32 %s285, 1
    %s287 = scalar_select %p284, %s285, %s286
    %p290 = pneg %p284
    %p291 = scmp.eq.s32.totalorder %s18, 1
    %p292 = por %p290, %p291
    %p293 = scmp.ne.s32.totalorder %s285, %s288
    %p294 = scmp.eq.s32.totalorder %s18, 0
    %p295 = por %p293, %p294
    %p296 = scmp.ne.s32.totalorder %s285, %s288
    %p297 = scmp.eq.s32.totalorder %s23, 1
    %p298 = por %p296, %p297
    %p299 = scmp.ne.s32.totalorder %s288, %s289
    %p300 = scmp.eq.s32.totalorder %s23, 0
    %p301 = por %p299, %p300
    %p302 = scmp.ne.s32.totalorder %s288, %s289
    %p303 = scmp.eq.s32.totalorder %s24, 1
    %p304 = por %p302, %p303
    %p306 = scmp.ne.s32.totalorder %s289, %s305
    %p307 = scmp.eq.s32.totalorder %s24, 0
    %p308 = por %p306, %p307
    %p309 = scmp.le.s32.totalorder 1, %s18
    %p310 = scmp.lt.s32.totalorder %s18, 3
    %p311 = pnand %p309, %p310
    %p312 = pneg %p311
    // Predicated region
    $region9: #{csp_block_forward.1} parent=5 // pred_check
      _
    $region10: #{csp_block_forward.1} parent=5 // pred_check_branch
      %314 = sbr.rel (%p311) target = $region12
    $region11: #{csp_block_forward.1} parent=5 // pred_region
      %s315 = ssub.s32 %s18, 1
      // Predicated region
      $region13: #{csp_block_forward.1} parent=11 // pred_check
        %p316 = pneg %p65
      $region14: #{csp_block_forward.1} parent=11 // pred_check_branch
        %318 = sbr.rel (%p316) target = $region16
      $region15: #{csp_block_forward.1} parent=11 // pred_region
        _
      $region16: #{csp_block_forward.1} parent=11 // pred_fallthru
        _
      // Predicated region
      $region17: #{csp_block_forward.1} parent=11 // pred_check
        %p319 = pneg %p86
      $region18: #{csp_block_forward.1} parent=11 // pred_check_branch
        %321 = sbr.rel (%p319) target = $region20
      $region19: #{csp_block_forward.1} parent=11 // pred_region
        _
      $region20: #{csp_block_forward.1} parent=11 // pred_fallthru
        _
      // Predicated region
      $region21: #{csp_block_forward.1} parent=11 // pred_check
        %p322 = pneg %p107
      $region22: #{csp_block_forward.1} parent=11 // pred_check_branch
        %324 = sbr.rel (%p322) target = $region24
      $region23: #{csp_block_forward.1} parent=11 // pred_region
        _
      $region24: #{csp_block_forward.1} parent=11 // pred_fallthru
        _
      // Predicated region
      $region25: #{csp_block_forward.1} parent=11 // pred_check
        %p325 = pneg %p128
      $region26: #{csp_block_forward.1} parent=11 // pred_check_branch
        %327 = sbr.rel (%p325) target = $region28
      $region27: #{csp_block_forward.1} parent=11 // pred_region
        _
      $region28: #{csp_block_forward.1} parent=11 // pred_fallthru
        _
      // Predicated region
      $region29: #{csp_block_forward.1} parent=11 // pred_check
        %p328 = pneg %p149
      $region30: #{csp_block_forward.1} parent=11 // pred_check_branch
        %330 = sbr.rel (%p328) target = $region32
      $region31: #{csp_block_forward.1} parent=11 // pred_region
        _
      $region32: #{csp_block_forward.1} parent=11 // pred_fallthru
        _
      // Predicated region
      $region33: #{csp_block_forward.1} parent=11 // pred_check
        %p331 = pneg %p170
      $region34: #{csp_block_forward.1} parent=11 // pred_check_branch
        %333 = sbr.rel (%p331) target = $region36
      $region35: #{csp_block_forward.1} parent=11 // pred_region
        _
      $region36: #{csp_block_forward.1} parent=11 // pred_fallthru
        _
      // Predicated region
      $region37: #{csp_block_forward.1} parent=11 // pred_check
        %p334 = pneg %p191
      $region38: #{csp_block_forward.1} parent=11 // pred_check_branch
        %336 = sbr.rel (%p334) target = $region40
      $region39: #{csp_block_forward.1} parent=11 // pred_region
        _
      $region40: #{csp_block_forward.1} parent=11 // pred_fallthru
        _
      // Predicated region
      $region41: #{csp_block_forward.1} parent=11 // pred_check
        %p337 = pneg %p212
      $region42: #{csp_block_forward.1} parent=11 // pred_check_branch
        %339 = sbr.rel (%p337) target = $region44
      $region43: #{csp_block_forward.1} parent=11 // pred_region
        _
      $region44: #{csp_block_forward.1} parent=11 // pred_fallthru
        _
      // Predicated region
      $region45: #{csp_block_forward.1} parent=11 // pred_check
        %p340 = pneg %p233
      $region46: #{csp_block_forward.1} parent=11 // pred_check_branch
        %342 = sbr.rel (%p340) target = $region48
      $region47: #{csp_block_forward.1} parent=11 // pred_region
        _
      $region48: #{csp_block_forward.1} parent=11 // pred_fallthru
        _
      // Predicated region
      $region49: #{csp_block_forward.1} parent=11 // pred_check
        %p343 = pneg %p254
      $region50: #{csp_block_forward.1} parent=11 // pred_check_branch
        %345 = sbr.rel (%p343) target = $region52
      $region51: #{csp_block_forward.1} parent=11 // pred_region
        _
      $region52: #{csp_block_forward.1} parent=11 // pred_fallthru
        _
      // Predicated region
      $region53: #{csp_block_forward.1} parent=11 // pred_check
        %p346 = pneg %p275
      $region54: #{csp_block_forward.1} parent=11 // pred_check_branch
        %348 = sbr.rel (%p346) target = $region56
      $region55: #{csp_block_forward.1} parent=11 // pred_region
        _
      $region56: #{csp_block_forward.1} parent=11 // pred_fallthru
        _
    $region12: #{csp_block_forward.1} parent=5 // pred_fallthru
      _
    %p349 = scmp.lt.s32.totalorder %s18, 2
    // Predicated region
    $region57: #{csp_block_forward.1} parent=5 // pred_check
      %p350 = pneg %p349
    $region58: #{csp_block_forward.1} parent=5 // pred_check_branch
      %352 = sbr.rel (%p350) target = $region60
    $region59: #{csp_block_forward.1} parent=5 // pred_region
      // Predicated region
      $region61: #{csp_block_forward.1} parent=59 // pred_check
        %p353 = pneg %p38
      $region62: #{csp_block_forward.1} parent=59 // pred_check_branch
        %355 = sbr.rel (%p353) target = $region64
      $region63: #{csp_block_forward.1} parent=59 // pred_region
        %s356 = smul.u32 8, %s18
        %p357 = scmp.lt.s32.totalorder %s356, 15
        %s358 = scalar_select %p357, %s356, 15
        %s359 = smul.addr %s358, 4
        %s360 = scalar_lea.vmem %s0, %s359
        %s361 = smul.u32 8, %s18
      $region64: #{csp_block_forward.1} parent=59 // pred_fallthru
        _
    $region60: #{csp_block_forward.1} parent=5 // pred_fallthru
      _
    %p362 = scmp.le.s32.totalorder 1, %s18
    %p363 = scmp.lt.s32.totalorder %s18, 3
    %p364 = pnand %p362, %p363
    %p365 = pneg %p364
    // Predicated region
    $region65: #{csp_block_forward.1} parent=5 // pred_check
      _
    $region66: #{csp_block_forward.1} parent=5 // pred_check_branch
      %367 = sbr.rel (%p364) target = $region68
    $region67: #{csp_block_forward.1} parent=5 // pred_region
      %s368 = ssub.s32 %s18, 1
      %s369 = smul.u32 8, %s23
      %p370 = scmp.lt.s32.totalorder %s369, 15
      %s371 = scalar_select %p370, %s369, 15
      %s372 = smul.addr %s371, 4
      %s373 = scalar_lea.vmem %s0, %s372
      %p374 = pneg %p44
      %p375 = pneg %p41
      %p376 = pneg %p65
      %p377 = pneg %p62
      %p378 = pneg %p86
      %p379 = pneg %p83
      %p380 = pneg %p107
      %p381 = pneg %p104
      %p382 = pneg %p128
      %p383 = pneg %p125
      %p384 = pneg %p149
      %p385 = pneg %p146
      %p386 = pneg %p170
      %p387 = pneg %p167
      %p388 = pneg %p191
      %p389 = pneg %p188
      %p390 = pneg %p212
      %p391 = pneg %p209
      %p392 = pneg %p233
      %p393 = pneg %p230
      %p394 = pneg %p254
      %p395 = pneg %p251
      %p396 = pneg %p275
      %p397 = pneg %p272
      %p398 = pneg %p301
      %p399 = pneg %p298
      %s400 = smul.u32 8, %s23
      %p401 = scmp.lt.s32.totalorder %s400, 15
      %s402 = scalar_select %p401, %s400, 15
      %s403 = smul.addr %s402, 4
      %s404 = scalar_lea.vmem %s12, %s403
      %s405 = smul.u32 8, %s23
      %p406 = scmp.lt.s32.totalorder %s405, 15
      %s407 = scalar_select %p406, %s405, 15
      %s408 = smul.addr %s407, 4
      %s409 = scalar_lea.vmem %s0, %s408
      %s410 = smul.u32 8, %s23
      %s411 = smul.u32 8, %s23
      %p412 = scmp.lt.s32.totalorder %s411, 15
      %s413 = scalar_select %p412, %s411, 15
      %s414 = smul.addr %s413, 4
      %s415 = scalar_lea.vmem %s12, %s414
      %s416 = smul.u32 8, %s23
      %v418 = vld [vmem:[%s409] sm:$0xf]
      %v419 = vld [vmem:[%s409 + $0x4] sm:$0xf]
      %v420 = vld [vmem:[%s409 + $0x8] sm:$0xf]
      %v421 = vld [vmem:[%s409 + $0xc] sm:$0xf]
      %v422 = vld [vmem:[%s409 + $0x10] sm:$0xf]
      %v423 = vld [vmem:[%s409 + $0x14] sm:$0xf]
      %v424 = vld [vmem:[%s409 + $0x18] sm:$0xf]
      %v425 = vld [vmem:[%s409 + $0x1c] sm:$0xf]
      %v426 = vld [vmem:[%s1] sm:$0xf]
      %v427 = vld [vmem:[%s1 + $0x4] sm:$0xf]
      %v428 = vld [vmem:[%s1 + $0x8] sm:$0xf]
      %v429 = vld [vmem:[%s1 + $0xc] sm:$0xf]
      %v430 = vld [vmem:[%s1 + $0x10] sm:$0x3]
      %v431 = vld [vmem:[%s2] sm:$0x1]
      %v433 = vlaneseq
      %v434 = vshrl.u32 %v433, 7
      %v435 = vsub.s32 0, %v434
      %v436 = vrot.slane %v431, %v435
      %v446 = vunpack.c.l.b16 %v418
      %v447 = vunpack.c.l.b16 %v419
      %v448 = vunpack.c.l.b16 %v420
      %v449 = vunpack.c.l.b16 %v421
      %v450 = vunpack.c.l.b16 %v422
      %v451 = vunpack.c.l.b16 %v423
      %v452 = vunpack.c.l.b16 %v424
      %v453 = vunpack.c.l.b16 %v425
      %v454 = vpack.c.b16 %v447, %v446
      %v455 = vpack.c.b16 %v449, %v448
      %v456 = vpack.c.b16 %v451, %v450
      %v457 = vpack.c.b16 %v453, %v452
      %v463 = vunpack.c.l.b16 %v426
      %v464 = vunpack.c.l.b16 %v427
      %v465 = vunpack.c.l.b16 %v428
      %v466 = vunpack.c.l.b16 %v429
      %v467 = vunpack.c.l.b16 %v430
      %v468 = vpack.c.b16 %v464, %v463
      %v469 = vpack.c.b16 %v466, %v465
      %v470 = vpack.c.b16 %v467, %v467
      %vm473 = vcmask 293888
      %v475 = vsel %vm473, %v454, 0
      %v478 = vsel %vm473, %v455, 0
      %v481 = vsel %vm473, %v456, 0
      %v484 = vsel %vm473, %v457, 0
      %vm486 = vcmask 1041408
      %v488 = vsel %vm486, %v470, 0
      %490 = vmatprep.subr.bf16.mxu0 0
      %491 = vmatpush1.bf16.msra.mxu0 %v468
      %492 = vmatprep.subr.bf16.mxu0 0
      %493 = vmatpush1.bf16.msra.mxu0 %v469
      %494 = vmatprep.subr.bf16.mxu0 0
      %495 = vmatpush1.bf16.msra.mxu0 %v488
      %496 = vmatprep.subr.bf16.mxu0 0
      %497 = vmatpush1.bf16.msra.mxu0 0
      %498 = vmatprep.subr.bf16.mxu0 0
      %499 = vmatpush1.bf16.msra.mxu0 0
      %500 = vmatprep.subr.bf16.mxu0 0
      %501 = vmatpush1.bf16.msra.mxu0 0
      %502 = vmatprep.subr.bf16.mxu0 0
      %503 = vmatpush1.bf16.msra.mxu0 0
      %504 = vmatprep.subr.bf16.mxu0 0
      %505 = vmatpush1.bf16.msra.mxu0 0
      %506 = vmatprep.subr.bf16.mxu0 0
      %507 = vmatpush1.bf16.msra.mxu0 0
      %508 = vmatprep.subr.bf16.mxu0 0
      %509 = vmatpush1.bf16.msra.mxu0 0
      %510 = vmatprep.subr.bf16.mxu0 0
      %511 = vmatpush1.bf16.msra.mxu0 0
      %512 = vmatprep.subr.bf16.mxu0 0
      %513 = vmatpush1.bf16.msra.mxu0 0
      %514 = vmatprep.subr.bf16.mxu0 0
      %515 = vmatpush1.bf16.msra.mxu0 0
      %516 = vmatprep.subr.bf16.mxu0 0
      %517 = vmatpush1.bf16.msra.mxu0 0
      %518 = vmatprep.subr.bf16.mxu0 0
      %519 = vmatpush1.bf16.msra.mxu0 0
      %520 = vmatprep.subr.bf16.mxu0 0
      %521 = vmatpush1.bf16.msra.mxu0 0
      %522 = vmatprep.mubr.bf16.mxu0 0
      %523 = vmatmul.mubr.bf16.gmra.mrb[0].mxu0 %v475
      %v524 = vpop.f32.mrb[0].mxu0
      %v525 = vadd.f32 %v436, %v524
      %v526 = vpop.f32.mrb[0].mxu0
      %v527 = vpop.f32.mrb[0].mxu0
      %v528 = vadd.f32 %v436, %v527
      %v529 = vpop.f32.mrb[0].mxu0
      %530 = vmatprep.mubr.bf16.mxu0 0
      %531 = vmatmul.mubr.bf16.gmra.mrb[0].mxu0 %v478
      %v532 = vpop.f32.mrb[0].mxu0
      %v533 = vadd.f32 %v436, %v532
      %v534 = vpop.f32.mrb[0].mxu0
      %v535 = vpop.f32.mrb[0].mxu0
      %v536 = vadd.f32 %v436, %v535
      %v537 = vpop.f32.mrb[0].mxu0
      %538 = vmatprep.mubr.bf16.mxu0 0
      %539 = vmatmul.mubr.bf16.gmra.mrb[0].mxu0 %v481
      %v540 = vpop.f32.mrb[0].mxu0
      %v541 = vadd.f32 %v436, %v540
      %v542 = vpop.f32.mrb[0].mxu0
      %v543 = vpop.f32.mrb[0].mxu0
      %v544 = vadd.f32 %v436, %v543
      %v545 = vpop.f32.mrb[0].mxu0
      %546 = vmatprep.mubr.bf16.mxu0 0
      %547 = vmatmul.mubr.bf16.gmra.mrb[0].mxu0 %v484
      %v548 = vpop.f32.mrb[0].mxu0
      %v549 = vadd.f32 %v436, %v548
      %v550 = vpop.f32.mrb[0].mxu0
      %v551 = vpop.f32.mrb[0].mxu0
      %v552 = vadd.f32 %v436, %v551
      %v553 = vpop.f32.mrb[0].mxu0
      %554 = vdwg.mxu0
      %v555 = vmin.f32 %v525, 20.0
      %v556 = vmin.f32 %v528, 20.0
      %v557 = vmin.f32 %v533, 20.0
      %v558 = vmin.f32 %v536, 20.0
      %v559 = vmin.f32 %v541, 20.0
      %v560 = vmin.f32 %v544, 20.0
      %v561 = vmin.f32 %v549, 20.0
      %v562 = vmin.f32 %v552, 20.0
      %v563 = vmul.f32 %v555, 1.442695
      %v564 = vpow.pop %v563
      %v565 = vmul.f32 %v556, 1.442695
      %v566 = vpow.pop %v565
      %v567 = vmul.f32 %v557, 1.442695
      %v568 = vpow.pop %v567
      %v569 = vmul.f32 %v558, 1.442695
      %v570 = vpow.pop %v569
      %v571 = vmul.f32 %v559, 1.442695
      %v572 = vpow.pop %v571
      %v573 = vmul.f32 %v560, 1.442695
      %v574 = vpow.pop %v573
      %v575 = vmul.f32 %v561, 1.442695
      %v576 = vpow.pop %v575
      %v577 = vmul.f32 %v562, 1.442695
      %v578 = vpow.pop %v577
      %v579 = vadd.f32 %v564, 2.0
      %v580 = vadd.f32 %v566, 2.0
      %v581 = vadd.f32 %v568, 2.0
      %v582 = vadd.f32 %v570, 2.0
      %v583 = vadd.f32 %v572, 2.0
      %v584 = vadd.f32 %v574, 2.0
      %v585 = vadd.f32 %v576, 2.0
      %v586 = vadd.f32 %v578, 2.0
      %v587 = vmul.f32 %v564, %v579
      %v588 = vmul.f32 %v566, %v580
      %v589 = vmul.f32 %v568, %v581
      %v590 = vmul.f32 %v570, %v582
      %v591 = vmul.f32 %v572, %v583
      %v592 = vmul.f32 %v574, %v584
      %v593 = vmul.f32 %v576, %v585
      %v594 = vmul.f32 %v578, %v586
      %v595 = vadd.f32 %v587, 2.0
      %v596 = vadd.f32 %v588, 2.0
      %v597 = vadd.f32 %v589, 2.0
      %v598 = vadd.f32 %v590, 2.0
      %v599 = vadd.f32 %v591, 2.0
      %v600 = vadd.f32 %v592, 2.0
      %v601 = vadd.f32 %v593, 2.0
      %v602 = vadd.f32 %v594, 2.0
      %v603 = vrcp.pop %v595
      %v604 = vmul.f32 %v587, %v603
      %v605 = vrcp.pop %v596
      %v606 = vmul.f32 %v588, %v605
      %v607 = vrcp.pop %v597
      %v608 = vmul.f32 %v589, %v607
      %v609 = vrcp.pop %v598
      %v610 = vmul.f32 %v590, %v609
      %v611 = vrcp.pop %v599
      %v612 = vmul.f32 %v591, %v611
      %v613 = vrcp.pop %v600
      %v614 = vmul.f32 %v592, %v613
      %v615 = vrcp.pop %v601
      %v616 = vmul.f32 %v593, %v615
      %v617 = vrcp.pop %v602
      %v618 = vmul.f32 %v594, %v617
      %vm619 = vcmp.gt.f32.partialorder %v525, 20.0
      %vm620 = vcmp.gt.f32.partialorder %v528, 20.0
      %vm621 = vcmp.gt.f32.partialorder %v533, 20.0
      %vm622 = vcmp.gt.f32.partialorder %v536, 20.0
      %vm623 = vcmp.gt.f32.partialorder %v541, 20.0
      %vm624 = vcmp.gt.f32.partialorder %v544, 20.0
      %vm625 = vcmp.gt.f32.partialorder %v549, 20.0
      %vm626 = vcmp.gt.f32.partialorder %v552, 20.0
      %v627 = vmul.f32 %v525, %v604
      %v628 = vmul.f32 %v528, %v606
      %v629 = vmul.f32 %v533, %v608
      %v630 = vmul.f32 %v536, %v610
      %v631 = vmul.f32 %v541, %v612
      %v632 = vmul.f32 %v544, %v614
      %v633 = vmul.f32 %v549, %v616
      %v634 = vmul.f32 %v552, %v618
      %v635 = vsel %vm619, %v525, %v627
      %v636 = vsel %vm620, %v528, %v628
      %v637 = vsel %vm621, %v533, %v629
      %v638 = vsel %vm622, %v536, %v630
      %v639 = vsel %vm623, %v541, %v631
      %v640 = vsel %vm624, %v544, %v632
      %v641 = vsel %vm625, %v549, %v633
      %v642 = vsel %vm626, %v552, %v634
      %v643 = vpack.c.bf16 %v636, %v635
      %v644 = vpack.c.bf16 %v638, %v637
      %v645 = vpack.c.bf16 %v640, %v639
      %v646 = vpack.c.bf16 %v642, %v641
      %v647 = vld [vmem:[%s3] sm:$0xf]
      %v648 = vld [vmem:[%s3 + $0x4] sm:$0xf]
      %v649 = vld [vmem:[%s3 + $0x8] sm:$0xf]
      %v650 = vld [vmem:[%s3 + $0xc] sm:$0xf]
      %v651 = vld [vmem:[%s3 + $0x10] sm:$0xf]
      %v652 = vld [vmem:[%s3 + $0x14] sm:$0xf]
      %v653 = vld [vmem:[%s3 + $0x18] sm:$0xf]
      %v654 = vld [vmem:[%s3 + $0x1c] sm:$0xf]
      %v655 = vld [vmem:[%s3 + $0x20] sm:$0xf]
      %v656 = vld [vmem:[%s3 + $0x24] sm:$0xf]
      %v657 = vld [vmem:[%s3 + $0x28] sm:$0xf]
      %v658 = vld [vmem:[%s3 + $0x2c] sm:$0xf]
      %v659 = vld [vmem:[%s3 + $0x30] sm:$0xf]
      %v660 = vld [vmem:[%s3 + $0x34] sm:$0xf]
      %v661 = vld [vmem:[%s3 + $0x38] sm:$0xf]
      %v662 = vld [vmem:[%s3 + $0x3c] sm:$0xf]
      %v663 = vld [vmem:[%s4] sm:$0x1]
      %v665 = vlaneseq
      %v666 = vshrl.u32 %v665, 7
      %v667 = vsub.s32 0, %v666
      %v668 = vrot.slane %v663, %v667
      %v686 = vunpack.c.l.b16 %v647
      %v687 = vunpack.c.l.b16 %v648
      %v688 = vunpack.c.l.b16 %v649
      %v689 = vunpack.c.l.b16 %v650
      %v690 = vunpack.c.l.b16 %v651
      %v691 = vunpack.c.l.b16 %v652
      %v692 = vunpack.c.l.b16 %v653
      %v693 = vunpack.c.l.b16 %v654
      %v694 = vunpack.c.l.b16 %v655
      %v695 = vunpack.c.l.b16 %v656
      %v696 = vunpack.c.l.b16 %v657
      %v697 = vunpack.c.l.b16 %v658
      %v698 = vunpack.c.l.b16 %v659
      %v699 = vunpack.c.l.b16 %v660
      %v700 = vunpack.c.l.b16 %v661
      %v701 = vunpack.c.l.b16 %v662
      %v702 = vpack.c.b16 %v687, %v686
      %v703 = vpack.c.b16 %v689, %v688
      %v704 = vpack.c.b16 %v691, %v690
      %v705 = vpack.c.b16 %v693, %v692
      %v706 = vpack.c.b16 %v695, %v694
      %v707 = vpack.c.b16 %v697, %v696
      %v708 = vpack.c.b16 %v699, %v698
      %v709 = vpack.c.b16 %v701, %v700
      %718 = vmatprep.subr.bf16.mxu0 0
      %719 = vmatpush1.bf16.msra.mxu0 %v702
      %720 = vmatprep.subr.bf16.mxu0 0
      %721 = vmatpush1.bf16.msra.mxu0 %v703
      %722 = vmatprep.subr.bf16.mxu0 0
      %723 = vmatpush1.bf16.msra.mxu0 %v704
      %724 = vmatprep.subr.bf16.mxu0 0
      %725 = vmatpush1.bf16.msra.mxu0 %v705
      %726 = vmatprep.subr.bf16.mxu0 0
      %727 = vmatpush1.bf16.msra.mxu0 %v706
      %728 = vmatprep.subr.bf16.mxu0 0
      %729 = vmatpush1.bf16.msra.mxu0 %v707
      %730 = vmatprep.subr.bf16.mxu0 0
      %731 = vmatpush1.bf16.msra.mxu0 %v708
      %732 = vmatprep.subr.bf16.mxu0 0
      %733 = vmatpush1.bf16.msra.mxu0 %v709
      %734 = vmatprep.subr.bf16.mxu0 0
      %735 = vmatpush1.bf16.msra.mxu0 0
      %736 = vmatprep.subr.bf16.mxu0 0
      %737 = vmatpush1.bf16.msra.mxu0 0
      %738 = vmatprep.subr.bf16.mxu0 0
      %739 = vmatpush1.bf16.msra.mxu0 0
      %740 = vmatprep.subr.bf16.mxu0 0
      %741 = vmatpush1.bf16.msra.mxu0 0
      %742 = vmatprep.subr.bf16.mxu0 0
      %743 = vmatpush1.bf16.msra.mxu0 0
      %744 = vmatprep.subr.bf16.mxu0 0
      %745 = vmatpush1.bf16.msra.mxu0 0
      %746 = vmatprep.subr.bf16.mxu0 0
      %747 = vmatpush1.bf16.msra.mxu0 0
      %748 = vmatprep.subr.bf16.mxu0 0
      %749 = vmatpush1.bf16.msra.mxu0 0
      %750 = vmatprep.mubr.bf16.mxu0 0
      %751 = vmatmul.mubr.bf16.gmra.mrb[0].mxu0 %v643
      %v752 = vpop.f32.mrb[0].mxu0
      %v753 = vadd.f32 %v668, %v752
      %v754 = vpop.f32.mrb[0].mxu0
      %v755 = vpop.f32.mrb[0].mxu0
      %v756 = vadd.f32 %v668, %v755
      %v757 = vpop.f32.mrb[0].mxu0
      %758 = vmatprep.mubr.bf16.mxu0 0
      %759 = vmatmul.mubr.bf16.gmra.mrb[0].mxu0 %v644
      %v760 = vpop.f32.mrb[0].mxu0
      %v761 = vadd.f32 %v668, %v760
      %v762 = vpop.f32.mrb[0].mxu0
      %v763 = vpop.f32.mrb[0].mxu0
      %v764 = vadd.f32 %v668, %v763
      %v765 = vpop.f32.mrb[0].mxu0
      %766 = vmatprep.mubr.bf16.mxu0 0
      %767 = vmatmul.mubr.bf16.gmra.mrb[0].mxu0 %v645
      %v768 = vpop.f32.mrb[0].mxu0
      %v769 = vadd.f32 %v668, %v768
      %v770 = vpop.f32.mrb[0].mxu0
      %v771 = vpop.f32.mrb[0].mxu0
      %v772 = vadd.f32 %v668, %v771
      %v773 = vpop.f32.mrb[0].mxu0
      %774 = vmatprep.mubr.bf16.mxu0 0
      %775 = vmatmul.mubr.bf16.gmra.mrb[0].mxu0 %v646
      %v776 = vpop.f32.mrb[0].mxu0
      %v777 = vadd.f32 %v668, %v776
      %v778 = vpop.f32.mrb[0].mxu0
      %v779 = vpop.f32.mrb[0].mxu0
      %v780 = vadd.f32 %v668, %v779
      %v781 = vpop.f32.mrb[0].mxu0
      %782 = vdwg.mxu0
      %v783 = vmin.f32 %v753, 20.0
      %v784 = vmin.f32 %v756, 20.0
      %v785 = vmin.f32 %v761, 20.0
      %v786 = vmin.f32 %v764, 20.0
      %v787 = vmin.f32 %v769, 20.0
      %v788 = vmin.f32 %v772, 20.0
      %v789 = vmin.f32 %v777, 20.0
      %v790 = vmin.f32 %v780, 20.0
      %v791 = vmul.f32 %v783, 1.442695
      %v792 = vpow.pop %v791
      %v793 = vmul.f32 %v784, 1.442695
      %v794 = vpow.pop %v793
      %v795 = vmul.f32 %v785, 1.442695
      %v796 = vpow.pop %v795
      %v797 = vmul.f32 %v786, 1.442695
      %v798 = vpow.pop %v797
      %v799 = vmul.f32 %v787, 1.442695
      %v800 = vpow.pop %v799
      %v801 = vmul.f32 %v788, 1.442695
      %v802 = vpow.pop %v801
      %v803 = vmul.f32 %v789, 1.442695
      %v804 = vpow.pop %v803
      %v805 = vmul.f32 %v790, 1.442695
      %v806 = vpow.pop %v805
      %v807 = vadd.f32 %v792, 2.0
      %v808 = vadd.f32 %v794, 2.0
      %v809 = vadd.f32 %v796, 2.0
      %v810 = vadd.f32 %v798, 2.0
      %v811 = vadd.f32 %v800, 2.0
      %v812 = vadd.f32 %v802, 2.0
      %v813 = vadd.f32 %v804, 2.0
      %v814 = vadd.f32 %v806, 2.0
      %v815 = vmul.f32 %v792, %v807
      %v816 = vmul.f32 %v794, %v808
      %v817 = vmul.f32 %v796, %v809
      %v818 = vmul.f32 %v798, %v810
      %v819 = vmul.f32 %v800, %v811
      %v820 = vmul.f32 %v802, %v812
      %v821 = vmul.f32 %v804, %v813
      %v822 = vmul.f32 %v806, %v814
      %v823 = vadd.f32 %v815, 2.0
      %v824 = vadd.f32 %v816, 2.0
      %v825 = vadd.f32 %v817, 2.0
      %v826 = vadd.f32 %v818, 2.0
      %v827 = vadd.f32 %v819, 2.0
      %v828 = vadd.f32 %v820, 2.0
      %v829 = vadd.f32 %v821, 2.0
      %v830 = vadd.f32 %v822, 2.0
      %v831 = vrcp.pop %v823
      %v832 = vmul.f32 %v815, %v831
      %v833 = vrcp.pop %v824
      %v834 = vmul.f32 %v816, %v833
      %v835 = vrcp.pop %v825
      %v836 = vmul.f32 %v817, %v835
      %v837 = vrcp.pop %v826
      %v838 = vmul.f32 %v818, %v837
      %v839 = vrcp.pop %v827
      %v840 = vmul.f32 %v819, %v839
      %v841 = vrcp.pop %v828
      %v842 = vmul.f32 %v820, %v841
      %v843 = vrcp.pop %v829
      %v844 = vmul.f32 %v821, %v843
      %v845 = vrcp.pop %v830
      %v846 = vmul.f32 %v822, %v845
      %vm847 = vcmp.gt.f32.partialorder %v753, 20.0
      %vm848 = vcmp.gt.f32.partialorder %v756, 20.0
      %vm849 = vcmp.gt.f32.partialorder %v761, 20.0
      %vm850 = vcmp.gt.f32.partialorder %v764, 20.0
      %vm851 = vcmp.gt.f32.partialorder %v769, 20.0
      %vm852 = vcmp.gt.f32.partialorder %v772, 20.0
      %vm853 = vcmp.gt.f32.partialorder %v777, 20.0
      %vm854 = vcmp.gt.f32.partialorder %v780, 20.0
      %v855 = vmul.f32 %v753, %v832
      %v856 = vmul.f32 %v756, %v834
      %v857 = vmul.f32 %v761, %v836
      %v858 = vmul.f32 %v764, %v838
      %v859 = vmul.f32 %v769, %v840
      %v860 = vmul.f32 %v772, %v842
      %v861 = vmul.f32 %v777, %v844
      %v862 = vmul.f32 %v780, %v846
      %v863 = vsel %vm847, %v753, %v855
      %v864 = vsel %vm848, %v756, %v856
      %v865 = vsel %vm849, %v761, %v857
      %v866 = vsel %vm850, %v764, %v858
      %v867 = vsel %vm851, %v769, %v859
      %v868 = vsel %vm852, %v772, %v860
      %v869 = vsel %vm853, %v777, %v861
      %v870 = vsel %vm854, %v780, %v862
      %v871 = vld [vmem:[%s5] sm:$0xf]
      %v872 = vld [vmem:[%s5 + $0x4] sm:$0xf]
      %v873 = vld [vmem:[%s5 + $0x8] sm:$0xf]
      %v874 = vld [vmem:[%s5 + $0xc] sm:$0xf]
      %v875 = vld [vmem:[%s5 + $0x10] sm:$0xf]
      %v876 = vld [vmem:[%s5 + $0x14] sm:$0xf]
      %v877 = vld [vmem:[%s5 + $0x18] sm:$0xf]
      %v878 = vld [vmem:[%s5 + $0x1c] sm:$0xf]
      %v879 = vld [vmem:[%s5 + $0x20] sm:$0xf]
      %v880 = vld [vmem:[%s5 + $0x24] sm:$0xf]
      %v881 = vld [vmem:[%s5 + $0x28] sm:$0xf]
      %v882 = vld [vmem:[%s5 + $0x2c] sm:$0xf]
      %v883 = vld [vmem:[%s5 + $0x30] sm:$0xf]
      %v884 = vld [vmem:[%s5 + $0x34] sm:$0xf]
      %v885 = vld [vmem:[%s5 + $0x38] sm:$0xf]
      %v886 = vld [vmem:[%s5 + $0x3c] sm:$0xf]
      %v887 = vld [vmem:[%s6] sm:$0x1]
      %v889 = vlaneseq
      %v890 = vshrl.u32 %v889, 7
      %v891 = vsub.s32 0, %v890
      %v892 = vrot.slane %v887, %v891
      %v910 = vunpack.c.l.b16 %v871
      %v911 = vunpack.c.l.b16 %v872
      %v912 = vunpack.c.l.b16 %v873
      %v913 = vunpack.c.l.b16 %v874
      %v914 = vunpack.c.l.b16 %v875
      %v915 = vunpack.c.l.b16 %v876
      %v916 = vunpack.c.l.b16 %v877
      %v917 = vunpack.c.l.b16 %v878
      %v918 = vunpack.c.l.b16 %v879
      %v919 = vunpack.c.l.b16 %v880
      %v920 = vunpack.c.l.b16 %v881
      %v921 = vunpack.c.l.b16 %v882
      %v922 = vunpack.c.l.b16 %v883
      %v923 = vunpack.c.l.b16 %v884
      %v924 = vunpack.c.l.b16 %v885
      %v925 = vunpack.c.l.b16 %v886
      %v926 = vpack.c.b16 %v911, %v910
      %v927 = vpack.c.b16 %v913, %v912
      %v928 = vpack.c.b16 %v915, %v914
      %v929 = vpack.c.b16 %v917, %v916
      %v930 = vpack.c.b16 %v919, %v918
      %v931 = vpack.c.b16 %v921, %v920
      %v932 = vpack.c.b16 %v923, %v922
      %v933 = vpack.c.b16 %v925, %v924
      %942 = vmatprep.subr.bf16.mxu0 0
      %943 = vmatpush1.bf16.msra.mxu0 %v926
      %944 = vmatprep.subr.bf16.mxu0 0
      %945 = vmatpush1.bf16.msra.mxu0 %v927
      %946 = vmatprep.subr.bf16.mxu0 0
      %947 = vmatpush1.bf16.msra.mxu0 %v928
      %948 = vmatprep.subr.bf16.mxu0 0
      %949 = vmatpush1.bf16.msra.mxu0 %v929
      %950 = vmatprep.subr.bf16.mxu0 0
      %951 = vmatpush1.bf16.msra.mxu0 %v930
      %952 = vmatprep.subr.bf16.mxu0 0
      %953 = vmatpush1.bf16.msra.mxu0 %v931
      %954 = vmatprep.subr.bf16.mxu0 0
      %955 = vmatpush1.bf16.msra.mxu0 %v932
      %956 = vmatprep.subr.bf16.mxu0 0
      %957 = vmatpush1.bf16.msra.mxu0 %v933
      %958 = vmatprep.subr.bf16.mxu0 0
      %959 = vmatpush1.bf16.msra.mxu0 0
      %960 = vmatprep.subr.bf16.mxu0 0
      %961 = vmatpush1.bf16.msra.mxu0 0
      %962 = vmatprep.subr.bf16.mxu0 0
      %963 = vmatpush1.bf16.msra.mxu0 0
      %964 = vmatprep.subr.bf16.mxu0 0
      %965 = vmatpush1.bf16.msra.mxu0 0
      %966 = vmatprep.subr.bf16.mxu0 0
      %967 = vmatpush1.bf16.msra.mxu0 0
      %968 = vmatprep.subr.bf16.mxu0 0
      %969 = vmatpush1.bf16.msra.mxu0 0
      %970 = vmatprep.subr.bf16.mxu0 0
      %971 = vmatpush1.bf16.msra.mxu0 0
      %972 = vmatprep.subr.bf16.mxu0 0
      %973 = vmatpush1.bf16.msra.mxu0 0
      %974 = vmatprep.mubr.bf16.mxu0 0
      %975 = vmatmul.mubr.bf16.gmra.mrb[0].mxu0 %v643
      %v976 = vpop.f32.mrb[0].mxu0
      %v977 = vadd.f32 %v892, %v976
      %v978 = vpop.f32.mrb[0].mxu0
      %v979 = vpop.f32.mrb[0].mxu0
      %v980 = vadd.f32 %v892, %v979
      %v981 = vpop.f32.mrb[0].mxu0
      %982 = vmatprep.mubr.bf16.mxu0 0
      %983 = vmatmul.mubr.bf16.gmra.mrb[0].mxu0 %v644
      %v984 = vpop.f32.mrb[0].mxu0
      %v985 = vadd.f32 %v892, %v984
      %v986 = vpop.f32.mrb[0].mxu0
      %v987 = vpop.f32.mrb[0].mxu0
      %v988 = vadd.f32 %v892, %v987
      %v989 = vpop.f32.mrb[0].mxu0
      %990 = vmatprep.mubr.bf16.mxu0 0
      %991 = vmatmul.mubr.bf16.gmra.mrb[0].mxu0 %v645
      %v992 = vpop.f32.mrb[0].mxu0
      %v993 = vadd.f32 %v892, %v992
      %v994 = vpop.f32.mrb[0].mxu0
      %v995 = vpop.f32.mrb[0].mxu0
      %v996 = vadd.f32 %v892, %v995
      %v997 = vpop.f32.mrb[0].mxu0
      %998 = vmatprep.mubr.bf16.mxu0 0
      %999 = vmatmul.mubr.bf16.gmra.mrb[0].mxu0 %v646
      %v1000 = vpop.f32.mrb[0].mxu0
      %v1001 = vadd.f32 %v892, %v1000
      %v1002 = vpop.f32.mrb[0].mxu0
      %v1003 = vpop.f32.mrb[0].mxu0
      %v1004 = vadd.f32 %v892, %v1003
      %v1005 = vpop.f32.mrb[0].mxu0
      %1006 = vdwg.mxu0
      %v1007 = vmin.f32 %v977, 20.0
      %v1008 = vmin.f32 %v980, 20.0
      %v1009 = vmin.f32 %v985, 20.0
      %v1010 = vmin.f32 %v988, 20.0
      %v1011 = vmin.f32 %v993, 20.0
      %v1012 = vmin.f32 %v996, 20.0
      %v1013 = vmin.f32 %v1001, 20.0
      %v1014 = vmin.f32 %v1004, 20.0
      %v1015 = vmul.f32 %v1007, 1.442695
      %v1016 = vpow.pop %v1015
      %v1017 = vmul.f32 %v1008, 1.442695
      %v1018 = vpow.pop %v1017
      %v1019 = vmul.f32 %v1009, 1.442695
      %v1020 = vpow.pop %v1019
      %v1021 = vmul.f32 %v1010, 1.442695
      %v1022 = vpow.pop %v1021
      %v1023 = vmul.f32 %v1011, 1.442695
      %v1024 = vpow.pop %v1023
      %v1025 = vmul.f32 %v1012, 1.442695
      %v1026 = vpow.pop %v1025
      %v1027 = vmul.f32 %v1013, 1.442695
      %v1028 = vpow.pop %v1027
      %v1029 = vmul.f32 %v1014, 1.442695
      %v1030 = vpow.pop %v1029
      %v1031 = vadd.f32 %v1016, 2.0
      %v1032 = vadd.f32 %v1018, 2.0
      %v1033 = vadd.f32 %v1020, 2.0
      %v1034 = vadd.f32 %v1022, 2.0
      %v1035 = vadd.f32 %v1024, 2.0
      %v1036 = vadd.f32 %v1026, 2.0
      %v1037 = vadd.f32 %v1028, 2.0
      %v1038 = vadd.f32 %v1030, 2.0
      %v1039 = vmul.f32 %v1016, %v1031
      %v1040 = vmul.f32 %v1018, %v1032
      %v1041 = vmul.f32 %v1020, %v1033
      %v1042 = vmul.f32 %v1022, %v1034
      %v1043 = vmul.f32 %v1024, %v1035
      %v1044 = vmul.f32 %v1026, %v1036
      %v1045 = vmul.f32 %v1028, %v1037
      %v1046 = vmul.f32 %v1030, %v1038
      %v1047 = vadd.f32 %v1039, 2.0
      %v1048 = vadd.f32 %v1040, 2.0
      %v1049 = vadd.f32 %v1041, 2.0
      %v1050 = vadd.f32 %v1042, 2.0
      %v1051 = vadd.f32 %v1043, 2.0
      %v1052 = vadd.f32 %v1044, 2.0
      %v1053 = vadd.f32 %v1045, 2.0
      %v1054 = vadd.f32 %v1046, 2.0
      %v1055 = vrcp.pop %v1047
      %v1056 = vmul.f32 %v1039, %v1055
      %v1057 = vrcp.pop %v1048
      %v1058 = vmul.f32 %v1040, %v1057
      %v1059 = vrcp.pop %v1049
      %v1060 = vmul.f32 %v1041, %v1059
      %v1061 = vrcp.pop %v1050
      %v1062 = vmul.f32 %v1042, %v1061
      %v1063 = vrcp.pop %v1051
      %v1064 = vmul.f32 %v1043, %v1063
      %v1065 = vrcp.pop %v1052
      %v1066 = vmul.f32 %v1044, %v1065
      %v1067 = vrcp.pop %v1053
      %v1068 = vmul.f32 %v1045, %v1067
      %v1069 = vrcp.pop %v1054
      %v1070 = vmul.f32 %v1046, %v1069
      %vm1071 = vcmp.gt.f32.partialorder %v977, 20.0
      %vm1072 = vcmp.gt.f32.partialorder %v980, 20.0
      %vm1073 = vcmp.gt.f32.partialorder %v985, 20.0
      %vm1074 = vcmp.gt.f32.partialorder %v988, 20.0
      %vm1075 = vcmp.gt.f32.partialorder %v993, 20.0
      %vm1076 = vcmp.gt.f32.partialorder %v996, 20.0
      %vm1077 = vcmp.gt.f32.partialorder %v1001, 20.0
      %vm1078 = vcmp.gt.f32.partialorder %v1004, 20.0
      %v1079 = vmul.f32 %v977, %v1056
      %v1080 = vmul.f32 %v980, %v1058
      %v1081 = vmul.f32 %v985, %v1060
      %v1082 = vmul.f32 %v988, %v1062
      %v1083 = vmul.f32 %v993, %v1064
      %v1084 = vmul.f32 %v996, %v1066
      %v1085 = vmul.f32 %v1001, %v1068
      %v1086 = vmul.f32 %v1004, %v1070
      %v1087 = vsel %vm1071, %v977, %v1079
      %v1088 = vsel %vm1072, %v980, %v1080
      %v1089 = vsel %vm1073, %v985, %v1081
      %v1090 = vsel %vm1074, %v988, %v1082
      %v1091 = vsel %vm1075, %v993, %v1083
      %v1092 = vsel %vm1076, %v996, %v1084
      %v1093 = vsel %vm1077, %v1001, %v1085
      %v1094 = vsel %vm1078, %v1004, %v1086
      %v1095 = vpack.c.bf16 %v1088, %v1087
      %v1096 = vpack.c.bf16 %v1090, %v1089
      %v1097 = vpack.c.bf16 %v1092, %v1091
      %v1098 = vpack.c.bf16 %v1094, %v1093
      %v1099 = vld [vmem:[%s7] sm:$0xf]
      %v1100 = vld [vmem:[%s7 + $0x4] sm:$0xf]
      %v1101 = vld [vmem:[%s7 + $0x8] sm:$0xf]
      %v1102 = vld [vmem:[%s7 + $0xc] sm:$0xf]
      %v1103 = vld [vmem:[%s7 + $0x10] sm:$0xf]
      %v1104 = vld [vmem:[%s7 + $0x14] sm:$0xf]
      %v1105 = vld [vmem:[%s7 + $0x18] sm:$0xf]
      %v1106 = vld [vmem:[%s7 + $0x1c] sm:$0xf]
      %v1107 = vld [vmem:[%s7 + $0x20] sm:$0xf]
      %v1108 = vld [vmem:[%s7 + $0x24] sm:$0xf]
      %v1109 = vld [vmem:[%s7 + $0x28] sm:$0xf]
      %v1110 = vld [vmem:[%s7 + $0x2c] sm:$0xf]
      %v1111 = vld [vmem:[%s7 + $0x30] sm:$0xf]
      %v1112 = vld [vmem:[%s7 + $0x34] sm:$0xf]
      %v1113 = vld [vmem:[%s7 + $0x38] sm:$0xf]
      %v1114 = vld [vmem:[%s7 + $0x3c] sm:$0xf]
      %v1115 = vld [vmem:[%s8] sm:$0x1]
      %v1117 = vlaneseq
      %v1118 = vshrl.u32 %v1117, 7
      %v1119 = vsub.s32 0, %v1118
      %v1120 = vrot.slane %v1115, %v1119
      %v1138 = vunpack.c.l.b16 %v1099
      %v1139 = vunpack.c.l.b16 %v1100
      %v1140 = vunpack.c.l.b16 %v1101
      %v1141 = vunpack.c.l.b16 %v1102
      %v1142 = vunpack.c.l.b16 %v1103
      %v1143 = vunpack.c.l.b16 %v1104
      %v1144 = vunpack.c.l.b16 %v1105
      %v1145 = vunpack.c.l.b16 %v1106
      %v1146 = vunpack.c.l.b16 %v1107
      %v1147 = vunpack.c.l.b16 %v1108
      %v1148 = vunpack.c.l.b16 %v1109
      %v1149 = vunpack.c.l.b16 %v1110
      %v1150 = vunpack.c.l.b16 %v1111
      %v1151 = vunpack.c.l.b16 %v1112
      %v1152 = vunpack.c.l.b16 %v1113
      %v1153 = vunpack.c.l.b16 %v1114
      %v1154 = vpack.c.b16 %v1139, %v1138
      %v1155 = vpack.c.b16 %v1141, %v1140
      %v1156 = vpack.c.b16 %v1143, %v1142
      %v1157 = vpack.c.b16 %v1145, %v1144
      %v1158 = vpack.c.b16 %v1147, %v1146
      %v1159 = vpack.c.b16 %v1149, %v1148
      %v1160 = vpack.c.b16 %v1151, %v1150
      %v1161 = vpack.c.b16 %v1153, %v1152
      %1170 = vmatprep.subr.bf16.mxu0 0
      %1171 = vmatpush1.bf16.msra.mxu0 %v1154
      %1172 = vmatprep.subr.bf16.mxu0 0
      %1173 = vmatpush1.bf16.msra.mxu0 %v1155
      %1174 = vmatprep.subr.bf16.mxu0 0
      %1175 = vmatpush1.bf16.msra.mxu0 %v1156
      %1176 = vmatprep.subr.bf16.mxu0 0
      %1177 = vmatpush1.bf16.msra.mxu0 %v1157
      %1178 = vmatprep.subr.bf16.mxu0 0
      %1179 = vmatpush1.bf16.msra.mxu0 %v1158
      %1180 = vmatprep.subr.bf16.mxu0 0
      %1181 = vmatpush1.bf16.msra.mxu0 %v1159
      %1182 = vmatprep.subr.bf16.mxu0 0
      %1183 = vmatpush1.bf16.msra.mxu0 %v1160
      %1184 = vmatprep.subr.bf16.mxu0 0
      %1185 = vmatpush1.bf16.msra.mxu0 %v1161
      %1186 = vmatprep.subr.bf16.mxu0 0
      %1187 = vmatpush1.bf16.msra.mxu0 0
      %1188 = vmatprep.subr.bf16.mxu0 0
      %1189 = vmatpush1.bf16.msra.mxu0 0
      %1190 = vmatprep.subr.bf16.mxu0 0
      %1191 = vmatpush1.bf16.msra.mxu0 0
      %1192 = vmatprep.subr.bf16.mxu0 0
      %1193 = vmatpush1.bf16.msra.mxu0 0
      %1194 = vmatprep.subr.bf16.mxu0 0
      %1195 = vmatpush1.bf16.msra.mxu0 0
      %1196 = vmatprep.subr.bf16.mxu0 0
      %1197 = vmatpush1.bf16.msra.mxu0 0
      %1198 = vmatprep.subr.bf16.mxu0 0
      %1199 = vmatpush1.bf16.msra.mxu0 0
      %1200 = vmatprep.subr.bf16.mxu0 0
      %1201 = vmatpush1.bf16.msra.mxu0 0
      %1202 = vmatprep.mubr.bf16.mxu0 0
      %1203 = vmatmul.mubr.bf16.gmra.mrb[0].mxu0 %v1095
      %v1204 = vpop.f32.mrb[0].mxu0
      %v1205 = vadd.f32 %v1120, %v1204
      %v1206 = vpop.f32.mrb[0].mxu0
      %v1207 = vpop.f32.mrb[0].mxu0
      %v1208 = vadd.f32 %v1120, %v1207
      %v1209 = vpop.f32.mrb[0].mxu0
      %1210 = vmatprep.mubr.bf16.mxu0 0
      %1211 = vmatmul.mubr.bf16.gmra.mrb[0].mxu0 %v1096
      %v1212 = vpop.f32.mrb[0].mxu0
      %v1213 = vadd.f32 %v1120, %v1212
      %v1214 = vpop.f32.mrb[0].mxu0
      %v1215 = vpop.f32.mrb[0].mxu0
      %v1216 = vadd.f32 %v1120, %v1215
      %v1217 = vpop.f32.mrb[0].mxu0
      %1218 = vmatprep.mubr.bf16.mxu0 0
      %1219 = vmatmul.mubr.bf16.gmra.mrb[0].mxu0 %v1097
      %v1220 = vpop.f32.mrb[0].mxu0
      %v1221 = vadd.f32 %v1120, %v1220
      %v1222 = vpop.f32.mrb[0].mxu0
      %v1223 = vpop.f32.mrb[0].mxu0
      %v1224 = vadd.f32 %v1120, %v1223
      %v1225 = vpop.f32.mrb[0].mxu0
      %1226 = vmatprep.mubr.bf16.mxu0 0
      %1227 = vmatmul.mubr.bf16.gmra.mrb[0].mxu0 %v1098
      %v1228 = vpop.f32.mrb[0].mxu0
      %v1229 = vadd.f32 %v1120, %v1228
      %v1230 = vpop.f32.mrb[0].mxu0
      %v1231 = vpop.f32.mrb[0].mxu0
      %v1232 = vadd.f32 %v1120, %v1231
      %v1233 = vpop.f32.mrb[0].mxu0
      %1234 = vdwg.mxu0
      %v1235 = vmin.f32 %v1205, 20.0
      %v1236 = vmin.f32 %v1208, 20.0
      %v1237 = vmin.f32 %v1213, 20.0
      %v1238 = vmin.f32 %v1216, 20.0
      %v1239 = vmin.f32 %v1221, 20.0
      %v1240 = vmin.f32 %v1224, 20.0
      %v1241 = vmin.f32 %v1229, 20.0
      %v1242 = vmin.f32 %v1232, 20.0
      %v1243 = vmul.f32 %v1235, 1.442695
      %v1244 = vpow.pop %v1243
      %v1245 = vmul.f32 %v1236, 1.442695
      %v1246 = vpow.pop %v1245
      %v1247 = vmul.f32 %v1237, 1.442695
      %v1248 = vpow.pop %v1247
      %v1249 = vmul.f32 %v1238, 1.442695
      %v1250 = vpow.pop %v1249
      %v1251 = vmul.f32 %v1239, 1.442695
      %v1252 = vpow.pop %v1251
      %v1253 = vmul.f32 %v1240, 1.442695
      %v1254 = vpow.pop %v1253
      %v1255 = vmul.f32 %v1241, 1.442695
      %v1256 = vpow.pop %v1255
      %v1257 = vmul.f32 %v1242, 1.442695
      %v1258 = vpow.pop %v1257
      %v1259 = vadd.f32 %v1244, 2.0
      %v1260 = vadd.f32 %v1246, 2.0
      %v1261 = vadd.f32 %v1248, 2.0
      %v1262 = vadd.f32 %v1250, 2.0
      %v1263 = vadd.f32 %v1252, 2.0
      %v1264 = vadd.f32 %v1254, 2.0
      %v1265 = vadd.f32 %v1256, 2.0
      %v1266 = vadd.f32 %v1258, 2.0
      %v1267 = vmul.f32 %v1244, %v1259
      %v1268 = vmul.f32 %v1246, %v1260
      %v1269 = vmul.f32 %v1248, %v1261
      %v1270 = vmul.f32 %v1250, %v1262
      %v1271 = vmul.f32 %v1252, %v1263
      %v1272 = vmul.f32 %v1254, %v1264
      %v1273 = vmul.f32 %v1256, %v1265
      %v1274 = vmul.f32 %v1258, %v1266
      %v1275 = vadd.f32 %v1267, 2.0
      %v1276 = vadd.f32 %v1268, 2.0
      %v1277 = vadd.f32 %v1269, 2.0
      %v1278 = vadd.f32 %v1270, 2.0
      %v1279 = vadd.f32 %v1271, 2.0
      %v1280 = vadd.f32 %v1272, 2.0
      %v1281 = vadd.f32 %v1273, 2.0
      %v1282 = vadd.f32 %v1274, 2.0
      %v1283 = vrcp.pop %v1275
      %v1284 = vmul.f32 %v1267, %v1283
      %v1285 = vrcp.pop %v1276
      %v1286 = vmul.f32 %v1268, %v1285
      %v1287 = vrcp.pop %v1277
      %v1288 = vmul.f32 %v1269, %v1287
      %v1289 = vrcp.pop %v1278
      %v1290 = vmul.f32 %v1270, %v1289
      %v1291 = vrcp.pop %v1279
      %v1292 = vmul.f32 %v1271, %v1291
      %v1293 = vrcp.pop %v1280
      %v1294 = vmul.f32 %v1272, %v1293
      %v1295 = vrcp.pop %v1281
      %v1296 = vmul.f32 %v1273, %v1295
      %v1297 = vrcp.pop %v1282
      %v1298 = vmul.f32 %v1274, %v1297
      %vm1299 = vcmp.gt.f32.partialorder %v1205, 20.0
      %vm1300 = vcmp.gt.f32.partialorder %v1208, 20.0
      %vm1301 = vcmp.gt.f32.partialorder %v1213, 20.0
      %vm1302 = vcmp.gt.f32.partialorder %v1216, 20.0
      %vm1303 = vcmp.gt.f32.partialorder %v1221, 20.0
      %vm1304 = vcmp.gt.f32.partialorder %v1224, 20.0
      %vm1305 = vcmp.gt.f32.partialorder %v1229, 20.0
      %vm1306 = vcmp.gt.f32.partialorder %v1232, 20.0
      %v1307 = vmul.f32 %v1205, %v1284
      %v1308 = vmul.f32 %v1208, %v1286
      %v1309 = vmul.f32 %v1213, %v1288
      %v1310 = vmul.f32 %v1216, %v1290
      %v1311 = vmul.f32 %v1221, %v1292
      %v1312 = vmul.f32 %v1224, %v1294
      %v1313 = vmul.f32 %v1229, %v1296
      %v1314 = vmul.f32 %v1232, %v1298
      %v1315 = vsel %vm1299, %v1205, %v1307
      %v1316 = vsel %vm1300, %v1208, %v1308
      %v1317 = vsel %vm1301, %v1213, %v1309
      %v1318 = vsel %vm1302, %v1216, %v1310
      %v1319 = vsel %vm1303, %v1221, %v1311
      %v1320 = vsel %vm1304, %v1224, %v1312
      %v1321 = vsel %vm1305, %v1229, %v1313
      %v1322 = vsel %vm1306, %v1232, %v1314
      %v1323 = vpack.c.bf16 %v1316, %v1315
      %v1324 = vpack.c.bf16 %v1318, %v1317
      %v1325 = vpack.c.bf16 %v1320, %v1319
      %v1326 = vpack.c.bf16 %v1322, %v1321
      %v1327 = vld [vmem:[%s9] sm:$0xf]
      %v1328 = vld [vmem:[%s9 + $0x4] sm:$0xf]
      %v1329 = vld [vmem:[%s9 + $0x8] sm:$0xf]
      %v1330 = vld [vmem:[%s9 + $0xc] sm:$0xf]
      %v1331 = vld [vmem:[%s9 + $0x10] sm:$0xf]
      %v1332 = vld [vmem:[%s9 + $0x14] sm:$0xf]
      %v1333 = vld [vmem:[%s9 + $0x18] sm:$0xf]
      %v1334 = vld [vmem:[%s9 + $0x1c] sm:$0xf]
      %v1335 = vld [vmem:[%s9 + $0x20] sm:$0xf]
      %v1336 = vld [vmem:[%s9 + $0x24] sm:$0xf]
      %v1337 = vld [vmem:[%s9 + $0x28] sm:$0xf]
      %v1338 = vld [vmem:[%s9 + $0x2c] sm:$0xf]
      %v1339 = vld [vmem:[%s9 + $0x30] sm:$0xf]
      %v1340 = vld [vmem:[%s9 + $0x34] sm:$0xf]
      %v1341 = vld [vmem:[%s9 + $0x38] sm:$0xf]
      %v1342 = vld [vmem:[%s9 + $0x3c] sm:$0xf]
      %v1343 = vpack.c.bf16 %v864, %v863
      %v1344 = vpack.c.bf16 %v866, %v865
      %v1345 = vpack.c.bf16 %v868, %v867
      %v1346 = vpack.c.bf16 %v870, %v869
      %v1347 = vld [vmem:[%s10] sm:$0xf]
      %v1348 = vld [vmem:[%s10 + $0x4] sm:$0xf]
      %v1349 = vld [vmem:[%s10 + $0x8] sm:$0xf]
      %v1350 = vld [vmem:[%s10 + $0xc] sm:$0xf]
      %v1351 = vld [vmem:[%s10 + $0x10] sm:$0xf]
      %v1352 = vld [vmem:[%s10 + $0x14] sm:$0xf]
      %v1353 = vld [vmem:[%s10 + $0x18] sm:$0xf]
      %v1354 = vld [vmem:[%s10 + $0x1c] sm:$0xf]
      %v1355 = vld [vmem:[%s10 + $0x20] sm:$0xf]
      %v1356 = vld [vmem:[%s10 + $0x24] sm:$0xf]
      %v1357 = vld [vmem:[%s10 + $0x28] sm:$0xf]
      %v1358 = vld [vmem:[%s10 + $0x2c] sm:$0xf]
      %v1359 = vld [vmem:[%s10 + $0x30] sm:$0xf]
      %v1360 = vld [vmem:[%s10 + $0x34] sm:$0xf]
      %v1361 = vld [vmem:[%s10 + $0x38] sm:$0xf]
      %v1362 = vld [vmem:[%s10 + $0x3c] sm:$0xf]
      %v1379 = vunpack.c.l.b16 %v1347
      %v1380 = vunpack.c.l.b16 %v1348
      %v1381 = vunpack.c.l.b16 %v1349
      %v1382 = vunpack.c.l.b16 %v1350
      %v1383 = vunpack.c.l.b16 %v1351
      %v1384 = vunpack.c.l.b16 %v1352
      %v1385 = vunpack.c.l.b16 %v1353
      %v1386 = vunpack.c.l.b16 %v1354
      %v1387 = vunpack.c.l.b16 %v1355
      %v1388 = vunpack.c.l.b16 %v1356
      %v1389 = vunpack.c.l.b16 %v1357
      %v1390 = vunpack.c.l.b16 %v1358
      %v1391 = vunpack.c.l.b16 %v1359
      %v1392 = vunpack.c.l.b16 %v1360
      %v1393 = vunpack.c.l.b16 %v1361
      %v1394 = vunpack.c.l.b16 %v1362
      %v1395 = vpack.c.b16 %v1380, %v1379
      %v1396 = vpack.c.b16 %v1382, %v1381
      %v1397 = vpack.c.b16 %v1384, %v1383
      %v1398 = vpack.c.b16 %v1386, %v1385
      %v1399 = vpack.c.b16 %v1388, %v1387
      %v1400 = vpack.c.b16 %v1390, %v1389
      %v1401 = vpack.c.b16 %v1392, %v1391
      %v1402 = vpack.c.b16 %v1394, %v1393
      %1411 = vmatprep.subr.bf16.mxu0 0
      %1412 = vmatpush1.bf16.msra.mxu0 %v1395
      %1413 = vmatprep.subr.bf16.mxu0 0
      %1414 = vmatpush1.bf16.msra.mxu0 %v1396
      %1415 = vmatprep.subr.bf16.mxu0 0
      %1416 = vmatpush1.bf16.msra.mxu0 %v1397
      %1417 = vmatprep.subr.bf16.mxu0 0
      %1418 = vmatpush1.bf16.msra.mxu0 %v1398
      %1419 = vmatprep.subr.bf16.mxu0 0
      %1420 = vmatpush1.bf16.msra.mxu0 %v1399
      %1421 = vmatprep.subr.bf16.mxu0 0
      %1422 = vmatpush1.bf16.msra.mxu0 %v1400
      %1423 = vmatprep.subr.bf16.mxu0 0
      %1424 = vmatpush1.bf16.msra.mxu0 %v1401
      %1425 = vmatprep.subr.bf16.mxu0 0
      %1426 = vmatpush1.bf16.msra.mxu0 %v1402
      %1427 = vmatprep.subr.bf16.mxu0 0
      %1428 = vmatpush1.bf16.msra.mxu0 0
      %1429 = vmatprep.subr.bf16.mxu0 0
      %1430 = vmatpush1.bf16.msra.mxu0 0
      %1431 = vmatprep.subr.bf16.mxu0 0
      %1432 = vmatpush1.bf16.msra.mxu0 0
      %1433 = vmatprep.subr.bf16.mxu0 0
      %1434 = vmatpush1.bf16.msra.mxu0 0
      %1435 = vmatprep.subr.bf16.mxu0 0
      %1436 = vmatpush1.bf16.msra.mxu0 0
      %1437 = vmatprep.subr.bf16.mxu0 0
      %1438 = vmatpush1.bf16.msra.mxu0 0
      %1439 = vmatprep.subr.bf16.mxu0 0
      %1440 = vmatpush1.bf16.msra.mxu0 0
      %1441 = vmatprep.subr.bf16.mxu0 0
      %1442 = vmatpush1.bf16.msra.mxu0 0
      %1443 = vmatprep.mubr.bf16.mxu0 0
      %1444 = vmatmul.mubr.bf16.gmra.mrb[0].mxu0 %v1343
      %v1445 = vpop.f32.mrb[0].mxu0
      %v1446 = vadd.f32 0.0, %v1445
      %v1447 = vpop.f32.mrb[0].mxu0
      %v1448 = vpop.f32.mrb[0].mxu0
      %v1449 = vadd.f32 0.0, %v1448
      %v1450 = vpop.f32.mrb[0].mxu0
      %1451 = vmatprep.mubr.bf16.mxu0 0
      %1452 = vmatmul.mubr.bf16.gmra.mrb[0].mxu0 %v1344
      %v1453 = vpop.f32.mrb[0].mxu0
      %v1454 = vadd.f32 0.0, %v1453
      %v1455 = vpop.f32.mrb[0].mxu0
      %v1456 = vpop.f32.mrb[0].mxu0
      %v1457 = vadd.f32 0.0, %v1456
      %v1458 = vpop.f32.mrb[0].mxu0
      %1459 = vmatprep.mubr.bf16.mxu0 0
      %1460 = vmatmul.mubr.bf16.gmra.mrb[0].mxu0 %v1345
      %v1461 = vpop.f32.mrb[0].mxu0
      %v1462 = vadd.f32 0.0, %v1461
      %v1463 = vpop.f32.mrb[0].mxu0
      %v1464 = vpop.f32.mrb[0].mxu0
      %v1465 = vadd.f32 0.0, %v1464
      %v1466 = vpop.f32.mrb[0].mxu0
      %1467 = vmatprep.mubr.bf16.mxu0 0
      %1468 = vmatmul.mubr.bf16.gmra.mrb[0].mxu0 %v1346
      %v1469 = vpop.f32.mrb[0].mxu0
      %v1470 = vadd.f32 0.0, %v1469
      %v1471 = vpop.f32.mrb[0].mxu0
      %v1472 = vpop.f32.mrb[0].mxu0
      %v1473 = vadd.f32 0.0, %v1472
      %v1474 = vpop.f32.mrb[0].mxu0
      %1475 = vdwg.mxu0
      %v1492 = vunpack.c.l.b16 %v1327
      %v1493 = vunpack.c.l.b16 %v1328
      %v1494 = vunpack.c.l.b16 %v1329
      %v1495 = vunpack.c.l.b16 %v1330
      %v1496 = vunpack.c.l.b16 %v1331
      %v1497 = vunpack.c.l.b16 %v1332
      %v1498 = vunpack.c.l.b16 %v1333
      %v1499 = vunpack.c.l.b16 %v1334
      %v1500 = vunpack.c.l.b16 %v1335
      %v1501 = vunpack.c.l.b16 %v1336
      %v1502 = vunpack.c.l.b16 %v1337
      %v1503 = vunpack.c.l.b16 %v1338
      %v1504 = vunpack.c.l.b16 %v1339
      %v1505 = vunpack.c.l.b16 %v1340
      %v1506 = vunpack.c.l.b16 %v1341
      %v1507 = vunpack.c.l.b16 %v1342
      %v1508 = vpack.c.b16 %v1493, %v1492
      %v1509 = vpack.c.b16 %v1495, %v1494
      %v1510 = vpack.c.b16 %v1497, %v1496
      %v1511 = vpack.c.b16 %v1499, %v1498
      %v1512 = vpack.c.b16 %v1501, %v1500
      %v1513 = vpack.c.b16 %v1503, %v1502
      %v1514 = vpack.c.b16 %v1505, %v1504
      %v1515 = vpack.c.b16 %v1507, %v1506
      %1524 = vmatprep.subr.bf16.mxu0 0
      %1525 = vmatpush1.bf16.msra.mxu0 %v1508
      %1526 = vmatprep.subr.bf16.mxu0 0
      %1527 = vmatpush1.bf16.msra.mxu0 %v1509
      %1528 = vmatprep.subr.bf16.mxu0 0
      %1529 = vmatpush1.bf16.msra.mxu0 %v1510
      %1530 = vmatprep.subr.bf16.mxu0 0
      %1531 = vmatpush1.bf16.msra.mxu0 %v1511
      %1532 = vmatprep.subr.bf16.mxu0 0
      %1533 = vmatpush1.bf16.msra.mxu0 %v1512
      %1534 = vmatprep.subr.bf16.mxu0 0
      %1535 = vmatpush1.bf16.msra.mxu0 %v1513
      %1536 = vmatprep.subr.bf16.mxu0 0
      %1537 = vmatpush1.bf16.msra.mxu0 %v1514
      %1538 = vmatprep.subr.bf16.mxu0 0
      %1539 = vmatpush1.bf16.msra.mxu0 %v1515
      %1540 = vmatprep.subr.bf16.mxu0 0
      %1541 = vmatpush1.bf16.msra.mxu0 0
      %1542 = vmatprep.subr.bf16.mxu0 0
      %1543 = vmatpush1.bf16.msra.mxu0 0
      %1544 = vmatprep.subr.bf16.mxu0 0
      %1545 = vmatpush1.bf16.msra.mxu0 0
      %1546 = vmatprep.subr.bf16.mxu0 0
      %1547 = vmatpush1.bf16.msra.mxu0 0
      %1548 = vmatprep.subr.bf16.mxu0 0
      %1549 = vmatpush1.bf16.msra.mxu0 0
      %1550 = vmatprep.subr.bf16.mxu0 0
      %1551 = vmatpush1.bf16.msra.mxu0 0
      %1552 = vmatprep.subr.bf16.mxu0 0
      %1553 = vmatpush1.bf16.msra.mxu0 0
      %1554 = vmatprep.subr.bf16.mxu0 0
      %1555 = vmatpush1.bf16.msra.mxu0 0
      %1556 = vmatprep.mubr.bf16.mxu0 0
      %1557 = vmatmul.mubr.bf16.gmra.mrb[0].mxu0 %v1323
      %v1558 = vpop.f32.mrb[0].mxu0
      %v1559 = vadd.f32 %v1446, %v1558
      %v1560 = vpop.f32.mrb[0].mxu0
      %v1561 = vpop.f32.mrb[0].mxu0
      %v1562 = vadd.f32 %v1449, %v1561
      %v1563 = vpop.f32.mrb[0].mxu0
      %1564 = vmatprep.mubr.bf16.mxu0 0
      %1565 = vmatmul.mubr.bf16.gmra.mrb[0].mxu0 %v1324
      %v1566 = vpop.f32.mrb[0].mxu0
      %v1567 = vadd.f32 %v1454, %v1566
      %v1568 = vpop.f32.mrb[0].mxu0
      %v1569 = vpop.f32.mrb[0].mxu0
      %v1570 = vadd.f32 %v1457, %v1569
      %v1571 = vpop.f32.mrb[0].mxu0
      %1572 = vmatprep.mubr.bf16.mxu0 0
      %1573 = vmatmul.mubr.bf16.gmra.mrb[0].mxu0 %v1325
      %v1574 = vpop.f32.mrb[0].mxu0
      %v1575 = vadd.f32 %v1462, %v1574
      %v1576 = vpop.f32.mrb[0].mxu0
      %v1577 = vpop.f32.mrb[0].mxu0
      %v1578 = vadd.f32 %v1465, %v1577
      %v1579 = vpop.f32.mrb[0].mxu0
      %1580 = vmatprep.mubr.bf16.mxu0 0
      %1581 = vmatmul.mubr.bf16.gmra.mrb[0].mxu0 %v1326
      %v1582 = vpop.f32.mrb[0].mxu0
      %v1583 = vadd.f32 %v1470, %v1582
      %v1584 = vpop.f32.mrb[0].mxu0
      %v1585 = vpop.f32.mrb[0].mxu0
      %v1586 = vadd.f32 %v1473, %v1585
      %v1587 = vpop.f32.mrb[0].mxu0
      %1588 = vdwg.mxu0
      %v1589 = vld [vmem:[%s11] sm:$0x1]
      %v1591 = vlaneseq
      %v1592 = vshrl.u32 %v1591, 7
      %v1593 = vsub.s32 0, %v1592
      %v1594 = vrot.slane %v1589, %v1593
      %v1596 = vadd.f32 %v1559, %v1594
      %v1597 = vadd.f32 %v1562, %v1594
      %v1598 = vadd.f32 %v1567, %v1594
      %v1599 = vadd.f32 %v1570, %v1594
      %v1600 = vadd.f32 %v1575, %v1594
      %v1601 = vadd.f32 %v1578, %v1594
      %v1602 = vadd.f32 %v1583, %v1594
      %v1603 = vadd.f32 %v1586, %v1594
      %v1604 = vmin.f32 %v1596, 20.0
      %v1605 = vmin.f32 %v1597, 20.0
      %v1606 = vmin.f32 %v1598, 20.0
      %v1607 = vmin.f32 %v1599, 20.0
      %v1608 = vmin.f32 %v1600, 20.0
      %v1609 = vmin.f32 %v1601, 20.0
      %v1610 = vmin.f32 %v1602, 20.0
      %v1611 = vmin.f32 %v1603, 20.0
      %v1612 = vmul.f32 %v1604, 1.442695
      %v1613 = vpow.pop %v1612
      %v1614 = vmul.f32 %v1605, 1.442695
      %v1615 = vpow.pop %v1614
      %v1616 = vmul.f32 %v1606, 1.442695
      %v1617 = vpow.pop %v1616
      %v1618 = vmul.f32 %v1607, 1.442695
      %v1619 = vpow.pop %v1618
      %v1620 = vmul.f32 %v1608, 1.442695
      %v1621 = vpow.pop %v1620
      %v1622 = vmul.f32 %v1609, 1.442695
      %v1623 = vpow.pop %v1622
      %v1624 = vmul.f32 %v1610, 1.442695
      %v1625 = vpow.pop %v1624
      %v1626 = vmul.f32 %v1611, 1.442695
      %v1627 = vpow.pop %v1626
      %v1628 = vadd.f32 %v1613, 2.0
      %v1629 = vadd.f32 %v1615, 2.0
      %v1630 = vadd.f32 %v1617, 2.0
      %v1631 = vadd.f32 %v1619, 2.0
      %v1632 = vadd.f32 %v1621, 2.0
      %v1633 = vadd.f32 %v1623, 2.0
      %v1634 = vadd.f32 %v1625, 2.0
      %v1635 = vadd.f32 %v1627, 2.0
      %v1636 = vmul.f32 %v1613, %v1628
      %v1637 = vmul.f32 %v1615, %v1629
      %v1638 = vmul.f32 %v1617, %v1630
      %v1639 = vmul.f32 %v1619, %v1631
      %v1640 = vmul.f32 %v1621, %v1632
      %v1641 = vmul.f32 %v1623, %v1633
      %v1642 = vmul.f32 %v1625, %v1634
      %v1643 = vmul.f32 %v1627, %v1635
      %v1644 = vadd.f32 %v1636, 2.0
      %v1645 = vadd.f32 %v1637, 2.0
      %v1646 = vadd.f32 %v1638, 2.0
      %v1647 = vadd.f32 %v1639, 2.0
      %v1648 = vadd.f32 %v1640, 2.0
      %v1649 = vadd.f32 %v1641, 2.0
      %v1650 = vadd.f32 %v1642, 2.0
      %v1651 = vadd.f32 %v1643, 2.0
      %v1652 = vrcp.pop %v1644
      %v1653 = vmul.f32 %v1636, %v1652
      %v1654 = vrcp.pop %v1645
      %v1655 = vmul.f32 %v1637, %v1654
      %v1656 = vrcp.pop %v1646
      %v1657 = vmul.f32 %v1638, %v1656
      %v1658 = vrcp.pop %v1647
      %v1659 = vmul.f32 %v1639, %v1658
      %v1660 = vrcp.pop %v1648
      %v1661 = vmul.f32 %v1640, %v1660
      %v1662 = vrcp.pop %v1649
      %v1663 = vmul.f32 %v1641, %v1662
      %v1664 = vrcp.pop %v1650
      %v1665 = vmul.f32 %v1642, %v1664
      %v1666 = vrcp.pop %v1651
      %v1667 = vmul.f32 %v1643, %v1666
      %vm1668 = vcmp.gt.f32.partialorder %v1596, 20.0
      %vm1669 = vcmp.gt.f32.partialorder %v1597, 20.0
      %vm1670 = vcmp.gt.f32.partialorder %v1598, 20.0
      %vm1671 = vcmp.gt.f32.partialorder %v1599, 20.0
      %vm1672 = vcmp.gt.f32.partialorder %v1600, 20.0
      %vm1673 = vcmp.gt.f32.partialorder %v1601, 20.0
      %vm1674 = vcmp.gt.f32.partialorder %v1602, 20.0
      %vm1675 = vcmp.gt.f32.partialorder %v1603, 20.0
      %v1676 = vmul.f32 %v1596, %v1653
      %v1677 = vmul.f32 %v1597, %v1655
      %v1678 = vmul.f32 %v1598, %v1657
      %v1679 = vmul.f32 %v1599, %v1659
      %v1680 = vmul.f32 %v1600, %v1661
      %v1681 = vmul.f32 %v1601, %v1663
      %v1682 = vmul.f32 %v1602, %v1665
      %v1683 = vmul.f32 %v1603, %v1667
      %v1684 = vsel %vm1668, %v1596, %v1676
      %v1685 = vsel %vm1669, %v1597, %v1677
      %v1686 = vsel %vm1670, %v1598, %v1678
      %v1687 = vsel %vm1671, %v1599, %v1679
      %v1688 = vsel %vm1672, %v1600, %v1680
      %v1689 = vsel %vm1673, %v1601, %v1681
      %v1690 = vsel %vm1674, %v1602, %v1682
      %v1691 = vsel %vm1675, %v1603, %v1683
      %v1692 = vpack.c.bf16 %v1685, %v1684
      %v1693 = vpack.c.bf16 %v1687, %v1686
      %v1694 = vpack.c.bf16 %v1689, %v1688
      %v1695 = vpack.c.bf16 %v1691, %v1690
      %v1700 = vunpack.c.l.b16 %v1692
      %v1701 = vunpack.c.h.b16 %v1692
      %v1702 = vunpack.c.l.b16 %v1693
      %v1703 = vunpack.c.h.b16 %v1693
      %v1704 = vunpack.c.l.b16 %v1694
      %v1705 = vunpack.c.h.b16 %v1694
      %v1706 = vunpack.c.l.b16 %v1695
      %v1707 = vunpack.c.h.b16 %v1695
      %v1708 = vpack.c.b16 %v1700, %v1700
      %v1709 = vpack.c.b16 %v1701, %v1701
      %v1710 = vpack.c.b16 %v1702, %v1702
      %v1711 = vpack.c.b16 %v1703, %v1703
      %v1712 = vpack.c.b16 %v1704, %v1704
      %v1713 = vpack.c.b16 %v1705, %v1705
      %v1714 = vpack.c.b16 %v1706, %v1706
      %v1715 = vpack.c.b16 %v1707, %v1707
      %1724 = vst [vmem:[%s415] sm:$0xf] %v1708
      %1725 = vst [vmem:[%s415 + $0x4] sm:$0xf] %v1709
      %1726 = vst [vmem:[%s415 + $0x8] sm:$0xf] %v1710
      %1727 = vst [vmem:[%s415 + $0xc] sm:$0xf] %v1711
      %1728 = vst [vmem:[%s415 + $0x10] sm:$0xf] %v1712
      %1729 = vst [vmem:[%s415 + $0x14] sm:$0xf] %v1713
      %1730 = vst [vmem:[%s415 + $0x18] sm:$0xf] %v1714
      %1731 = vst [vmem:[%s415 + $0x1c] sm:$0xf] %v1715
      %s1732 = smul.u32 8, %s23
      %p1733 = scmp.lt.s32.totalorder %s1732, 15
      %s1734 = scalar_select %p1733, %s1732, 15
      %s1735 = smul.addr %s1734, 4
      %s1736 = scalar_lea.vmem %s12, %s1735
      // Predicated region
      $region69: #{csp_block_forward.1} parent=67 // pred_check
        %p1737 = pneg %p298
      $region70: #{csp_block_forward.1} parent=67 // pred_check_branch
        %1739 = sbr.rel (%p1737) target = $region72
      $region71: #{csp_block_forward.1} parent=67 // pred_region
        %s1740 = smul.u32 8, %s23
      $region72: #{csp_block_forward.1} parent=67 // pred_fallthru
        _
    $region68: #{csp_block_forward.1} parent=5 // pred_fallthru
      _
    %p1741 = scmp.le.s32.totalorder 2, %s18
    // Predicated region
    $region73: #{csp_block_forward.1} parent=5 // pred_check
      %p1742 = pneg %p1741
    $region74: #{csp_block_forward.1} parent=5 // pred_check_branch
      %1744 = sbr.rel (%p1742) target = $region76
    $region75: #{csp_block_forward.1} parent=5 // pred_region
      %s1745 = ssub.s32 %s18, 2
      // Predicated region
      $region77: #{csp_block_forward.1} parent=75 // pred_check
        %p1746 = pneg %p304
      $region78: #{csp_block_forward.1} parent=75 // pred_check_branch
        %1748 = sbr.rel (%p1746) target = $region80
      $region79: #{csp_block_forward.1} parent=75 // pred_region
        %s1749 = smul.u32 8, %s24
        %p1750 = scmp.lt.s32.totalorder %s1749, 15
        %s1751 = scalar_select %p1750, %s1749, 15
        %s1752 = smul.addr %s1751, 4
        %s1753 = scalar_lea.vmem %s12, %s1752
      $region80: #{csp_block_forward.1} parent=75 // pred_fallthru
        _
    $region76: #{csp_block_forward.1} parent=5 // pred_fallthru
      _
  $region6: #{csp_block_forward.1} parent=0 // loop_footer
    %s22 = sadd.s32 1, %s18
  $region7: #{csp_block_forward.1} parent=0 // loop_footer_branch
    %17 = sbr.rel target = $region3
  $region8: #{csp_block_forward.1} parent=0 // loop_exit
    _

</llo_original>
